<compile_context>
chip_gen: v6e
topology: v6e:2x2x1
jax: 0.10.0
libtpu: 0.0.40
codegen_flags: <defaults>
</compile_context>

<pallas_src>
import jax
import jax.numpy as jnp
from jax.experimental import pallas as pl
from jax.experimental.pallas import tpu as pltpu

INPUT_SIZE = 8
HIDDEN = 64
NUM_LAYERS = 2          # hard-wired: layer-0 and layer-1 cells inside the kernel
NUM_CLASSES = 2

IN_PAD = 128            # input features padded to one 128-lane vreg
B_PAD = 8               # batch padded to the 8-sublane vreg height
OUT_PAD = 128           # lane-dense logits slab
GATES = 4 * HIDDEN      # native gate width (no per-gate padding): 256 lanes


# --------------------------------------------------------------------------- #
# Kernel
# --------------------------------------------------------------------------- #
def rnn_kernel(x_ref, wih0_ref, b0_ref, whh0_ref, w1_ref, b1_ref,
               wfc_ref, bfc_ref, out_ref, xproj_ref, state_ref):
    chunk = pl.program_id(0)
    rows = x_ref.shape[0]               # T * B_PAD rows of this time chunk
    T = rows // B_PAD

    # h/c for both layers persist in VMEM scratch across time chunks.
    @pl.when(chunk == 0)
    def _init():
        state_ref[...] = jnp.zeros_like(state_ref)

    # Hoist weight loads and the bias broadcast out of the time loop
    # (JAX does not CSE broadcast_in_dim inside loops).
    whh0 = whh0_ref[...]                                     # (H, 4H)
    w1 = w1_ref[...]                                         # (2H, 4H)
    b1 = jnp.broadcast_to(b1_ref[...], (B_PAD, GATES))       # (Bp, 4H)

    # ---- Layer-0 input projection for the whole chunk: one big MXU matmul
    #      (M = T*B_pad actually fills the MXU); bias folded in here so the
    #      serial per-step loop carries no '+ b0' work. ----
    wih0 = wih0_ref[...]                                     # (IN_PAD, 4H)
    xg = jnp.dot(x_ref[...].astype(wih0.dtype), wih0,
                 preferred_element_type=jnp.float32)
    xproj_ref[...] = xg + jnp.broadcast_to(b0_ref[...], (rows, GATES))

    h0 = state_ref[0]
    c0 = state_ref[1]
    h1 = state_ref[2]
    c1 = state_ref[3]

    def lstm_gates(gates, c):
        # native 64-lane gate slices, PyTorch order (i, f, g, o)
        i = jax.nn.sigmoid(gates[:, 0 * HIDDEN:1 * HIDDEN])
        f = jax.nn.sigmoid(gates[:, 1 * HIDDEN:2 * HIDDEN])
        g = jnp.tanh(gates[:, 2 * HIDDEN:3 * HIDDEN])
        o = jax.nn.sigmoid(gates[:, 3 * HIDDEN:4 * HIDDEN])
        c_new = f * c + i * g
        return o * jnp.tanh(c_new), c_new

    def step(t, carry):
        h0, c0, h1, c1 = carry
        row0 = pl.multiple_of(t * B_PAD, B_PAD)
        # layer 0: precomputed x-projection + recurrent matmul (K = 64)
        g0 = xproj_ref[pl.ds(row0, B_PAD), :] + jnp.dot(
            h0.astype(whh0.dtype), whh0, preferred_element_type=jnp.float32)
        h0, c0 = lstm_gates(g0, c0)
        # layer 1: fused [h0 | h1] @ [[W_ih1],[W_hh1]]  (K = 128)
        g1 = jnp.dot(jnp.concatenate([h0, h1], axis=-1).astype(w1.dtype),
                     w1, preferred_element_type=jnp.float32) + b1
        h1, c1 = lstm_gates(g1, c1)
        return (h0, c0, h1, c1)

    # Bounded unroll: the per-step body is tiny, a modest unroll keeps LLO
    # scheduling visibility without blowing up I-mem / vreg live ranges.
    h0, c0, h1, c1 = jax.lax.fori_loop(0, T, step, (h0, c0, h1, c1),
                                       unroll=min(T, 8))

    # Carry state to the next chunk.
    state_ref[0] = h0
    state_ref[1] = c0
    state_ref[2] = h1
    state_ref[3] = c1

    # Final FC on the last hidden state; lane-dense (Bp, 128) store.
    @pl.when(chunk == pl.num_programs(0) - 1)
    def _finalize():
        wfc = wfc_ref[...]
        out_ref[...] = (jnp.dot(h1.astype(wfc.dtype), wfc,
                                preferred_element_type=jnp.float32)
                        + bfc_ref[...])


# --------------------------------------------------------------------------- #
# Parameter packing (PyTorch layout -> kernel layout; NO per-gate padding)
# --------------------------------------------------------------------------- #
def pack_params(params, *, use_bf16=False):
    (wih0, whh0, bih0, bhh0,
     wih1, whh1, bih1, bhh1, fcw, fcb) = params
    wdt = jnp.bfloat16 if use_bf16 else jnp.float32

    # Layer 0: input projection weight (rows = features padded 8 -> 128),
    # recurrent weight stays native (64, 256).
    wih0_p = jnp.pad(wih0.T, ((0, IN_PAD - INPUT_SIZE), (0, 0))).astype(wdt)
    whh0_p = whh0.T.astype(wdt)                                  # (64, 256)
    b0_p = (bih0 + bhh0)[None, :].astype(jnp.float32)            # (1, 256)

    # Layer 1: fused rows = [h0 part ; h1 part] -> (128, 256)
    w1_p = jnp.concatenate([wih1.T, whh1.T], axis=0).astype(wdt)
    b1_p = (bih1 + bhh1)[None, :].astype(jnp.float32)            # (1, 256)

    # FC: (C, H) -> (64, 128) lane-dense, bias (1, 128)
    wfc_p = jnp.pad(fcw.T, ((0, 0), (0, OUT_PAD - NUM_CLASSES))).astype(wdt)
    bfc_p = jnp.pad(fcb[None, :],
                    ((0, 0), (0, OUT_PAD - NUM_CLASSES))).astype(jnp.float32)
    return wih0_p, b0_p, whh0_p, w1_p, b1_p, wfc_p, bfc_p


def _pick_chunk(seq_len, requested):
    """Largest chunk <= requested that divides seq_len (keeps chunks exact)."""
    t = max(1, min(int(requested), seq_len))
    while seq_len % t:
        t -= 1
    return t


# --------------------------------------------------------------------------- #
# Wrapper
# --------------------------------------------------------------------------- #
def rnn_forward(x, params, *, time_chunk=None, use_bf16=False):
    """x: (B, S, INPUT_SIZE) float32 -> logits (B, NUM_CLASSES)."""
    B, S, F = x.shape
    assert F == INPUT_SIZE
    assert B <= B_PAD, "this toy wrapper assumes batch <= 8"

    T = _pick_chunk(S, time_chunk if time_chunk is not None else min(S, 512))
    num_chunks = S // T

    wih0, b0, whh0, w1, b1, wfc, bfc = pack_params(params, use_bf16=use_bf16)

    # time-major, zero-pad batch to 8 and features to 128, flatten (S, Bp)
    # into rows so each chunk's x block is a clean (T*8, 128) tile slab.
    x_k = jnp.pad(jnp.transpose(x, (1, 0, 2)),
                  ((0, 0), (0, B_PAD - B), (0, IN_PAD - INPUT_SIZE)))
    x_k = x_k.reshape(S * B_PAD, IN_PAD)

    def resident(shape):
        # weights/biases: same block every chunk (stay resident in VMEM)
        return pl.BlockSpec(shape, lambda c: tuple(0 for _ in shape))

    grid_spec = pltpu.PrefetchScalarGridSpec(
        num_scalar_prefetch=0,
        grid=(num_chunks,),                 # time chunks; recurrence inside
        in_specs=[
            pl.BlockSpec((T * B_PAD, IN_PAD), lambda c: (c, 0)),  # x, streamed
            resident((IN_PAD, GATES)),      # W_ih0 (padded rows)
            resident((1, GATES)),           # b0 = b_ih0 + b_hh0
            resident((HIDDEN, GATES)),      # W_hh0
            resident((2 * HIDDEN, GATES)),  # fused layer-1 weights
            resident((1, GATES)),           # b1 = b_ih1 + b_hh1
            resident((HIDDEN, OUT_PAD)),    # fc weight (lane padded)
            resident((1, OUT_PAD)),         # fc bias (lane padded)
        ],
        out_specs=pl.BlockSpec((B_PAD, OUT_PAD), lambda c: (0, 0)),
        scratch_shapes=[
            pltpu.VMEM((T * B_PAD, GATES), jnp.float32),   # per-chunk x-projection
            pltpu.VMEM((4, B_PAD, HIDDEN), jnp.float32),   # h0, c0, h1, c1 carry
        ],
    )

    out_full = pl.pallas_call(
        rnn_kernel,
        out_shape=jax.ShapeDtypeStruct((B_PAD, OUT_PAD), jnp.float32),
        grid_spec=grid_spec,
        compiler_params=pltpu.CompilerParams(
            dimension_semantics=("arbitrary",)),   # chunks carry state: serial
    )(x_k, wih0, b0, whh0, w1, b1, wfc, bfc)

    return out_full[:B, :NUM_CLASSES]


# --------------------------------------------------------------------------- #
# Pure-JAX reference (matches torch.nn.LSTM + Linear semantics)
# --------------------------------------------------------------------------- #
def ref_forward(x, params):
    (wih0, whh0, bih0, bhh0,
     wih1, whh1, bih1, bhh1, fcw, fcb) = params
    B = x.shape[0]

    def cell(inp, h, c, wih, whh, bih, bhh):
        gates = inp @ wih.T + h @ whh.T + bih + bhh
        i, f, g, o = jnp.split(gates, 4, axis=-1)
        c_new = jax.nn.sigmoid(f) * c + jax.nn.sigmoid(i) * jnp.tanh(g)
        h_new = jax.nn.sigmoid(o) * jnp.tanh(c_new)
        return h_new, c_new

    def step(carry, x_t):
        h0, c0, h1, c1 = carry
        h0n, c0n = cell(x_t, h0, c0, wih0, whh0, bih0, bhh0)
        h1n, c1n = cell(h0n, h1, c1, wih1, whh1, bih1, bhh1)
        return (h0n, c0n, h1n, c1n), None

    init = tuple(jnp.zeros((B, HIDDEN), jnp.float32) for _ in range(4))
    carry, _ = jax.lax.scan(step, init, jnp.swapaxes(x, 0, 1))
    return carry[2] @ fcw.T + fcb


# --------------------------------------------------------------------------- #
# Deterministic init (PyTorch LSTM/Linear shapes)
# --------------------------------------------------------------------------- #
def init_params(key):
    k = 1.0 / jnp.sqrt(jnp.float32(HIDDEN))
    keys = jax.random.split(key, 10)
    H4 = 4 * HIDDEN

    def u(kk, shape):
        return jax.random.uniform(kk, shape, jnp.float32, -k, k)

    wih0 = u(keys[0], (H4, INPUT_SIZE))
    whh0 = u(keys[1], (H4, HIDDEN))
    bih0 = u(keys[2], (H4,))
    bhh0 = u(keys[3], (H4,))
    wih1 = u(keys[4], (H4, HIDDEN))
    whh1 = u(keys[5], (H4, HIDDEN))
    bih1 = u(keys[6], (H4,))
    bhh1 = u(keys[7], (H4,))
    fcw = u(keys[8], (NUM_CLASSES, HIDDEN))
    fcb = u(keys[9], (NUM_CLASSES,))
    return (wih0, whh0, bih0, bhh0, wih1, whh1, bih1, bhh1, fcw, fcb)


if __name__ == "__main__":
    key = jax.random.PRNGKey(0)
    pkey, xkey = jax.random.split(key)
    params = init_params(pkey)

    B, S = 2, 8
    x = jax.random.normal(xkey, (B, S, INPUT_SIZE), jnp.float32)

    ref = ref_forward(x, params)

    # f32 path, single time chunk (grid=(1,))
    out_single = jax.block_until_ready(rnn_forward(x, params))
    assert out_single.shape == (B, NUM_CLASSES)
    assert jnp.allclose(out_single, ref, atol=1e-5, rtol=1e-5), (out_single, ref)

    # f32 path, chunked streaming (grid=(2,)) exercising the scratch-carried h/c
    out_chunked = jax.block_until_ready(rnn_forward(x, params, time_chunk=4))
    assert jnp.allclose(out_chunked, ref, atol=1e-5, rtol=1e-5), (out_chunked, ref)

    # bf16 MXU path (v6e/v7x perf path) with relaxed tolerance
    out_bf16 = jax.block_until_ready(
        rnn_forward(x, params, time_chunk=4, use_bf16=True))
    assert jnp.allclose(out_bf16, ref, atol=5e-2, rtol=5e-2), (out_bf16, ref)

    print("KERNEL_OK")
</pallas_src>

<mosaic_0001>
module attributes {stable_mosaic.version = 11 : i64} {
  func.func @rnn_kernel(%arg0: i32, %arg1: memref<64x128xf32, #tpu.memory_space<vmem>>, %arg2: memref<128x256xf32, #tpu.memory_space<vmem>>, %arg3: memref<1x256xf32, #tpu.memory_space<vmem>>, %arg4: memref<64x256xf32, #tpu.memory_space<vmem>>, %arg5: memref<128x256xf32, #tpu.memory_space<vmem>>, %arg6: memref<1x256xf32, #tpu.memory_space<vmem>>, %arg7: memref<64x128xf32, #tpu.memory_space<vmem>>, %arg8: memref<1x128xf32, #tpu.memory_space<vmem>>, %arg9: memref<8x128xf32, #tpu.memory_space<vmem>>, %arg10: memref<64x256xf32, #tpu.memory_space<vmem>>, %arg11: memref<4x8x64xf32, #tpu.memory_space<vmem>>) attributes {dimension_semantics = [#tpu.dimension_semantics<arbitrary>], iteration_bounds = array<i64: 1>, scalar_prefetch = 0 : i64, scratch_operands = 2 : i64, tpu.core_type = #tpu.core_type<tc>, window_params = [{transform_indices = @transform_0, window_bounds = array<i64: 64, 128>}, {pipeline_mode = #tpu.pipeline_mode<synchronous>, transform_indices = @transform_1, window_bounds = array<i64: 128, 256>}, {pipeline_mode = #tpu.pipeline_mode<synchronous>, transform_indices = @transform_2, window_bounds = array<i64: 1, 256>}, {pipeline_mode = #tpu.pipeline_mode<synchronous>, transform_indices = @transform_3, window_bounds = array<i64: 64, 256>}, {pipeline_mode = #tpu.pipeline_mode<synchronous>, transform_indices = @transform_4, window_bounds = array<i64: 128, 256>}, {pipeline_mode = #tpu.pipeline_mode<synchronous>, transform_indices = @transform_5, window_bounds = array<i64: 1, 256>}, {pipeline_mode = #tpu.pipeline_mode<synchronous>, transform_indices = @transform_6, window_bounds = array<i64: 64, 128>}, {pipeline_mode = #tpu.pipeline_mode<synchronous>, transform_indices = @transform_7, window_bounds = array<i64: 1, 128>}, {pipeline_mode = #tpu.pipeline_mode<synchronous>, transform_indices = @transform_8, window_bounds = array<i64: 8, 128>}]} {
    %c0_i32 = arith.constant 0 : i32
    %0 = arith.cmpi eq, %arg0, %c0_i32 : i32
    %1 = arith.extui %0 : i1 to i32
    %c0_i32_0 = arith.constant 0 : i32
    %2 = arith.cmpi ne, %1, %c0_i32_0 : i32
    scf.if %2 {
      %cst_118 = arith.constant 0.000000e+00 : f32
      %511 = vector.broadcast %cst_118 : f32 to vector<4x8x64xf32>
      %c0_119 = arith.constant 0 : index
      %c0_120 = arith.constant 0 : index
      %c0_121 = arith.constant 0 : index
      %512 = vector.load %arg11[%c0_119, %c0_120, %c0_121] : memref<4x8x64xf32, #tpu.memory_space<vmem>>, vector<4x8x64xf32>
      tpu.vector_store %arg11[%c0_119, %c0_120, %c0_121], %511 {strides = array<i32>} : memref<4x8x64xf32, #tpu.memory_space<vmem>>, vector<4x8x64xf32>,
    } else {
    }
    %c0 = arith.constant 0 : index
    %c0_1 = arith.constant 0 : index
    %3 = vector.load %arg4[%c0, %c0_1] : memref<64x256xf32, #tpu.memory_space<vmem>>, vector<64x256xf32>
    %c0_2 = arith.constant 0 : index
    %c0_3 = arith.constant 0 : index
    %4 = vector.load %arg5[%c0_2, %c0_3] : memref<128x256xf32, #tpu.memory_space<vmem>>, vector<128x256xf32>
    %c0_4 = arith.constant 0 : index
    %c0_5 = arith.constant 0 : index
    %5 = vector.load %arg6[%c0_4, %c0_5] : memref<1x256xf32, #tpu.memory_space<vmem>>, vector<1x256xf32>
    %6 = vector.shape_cast %5 : vector<1x256xf32> to vector<1x256xf32>
    %7 = vector.broadcast %6 : vector<1x256xf32> to vector<8x256xf32>
    %c0_6 = arith.constant 0 : index
    %c0_7 = arith.constant 0 : index
    %8 = vector.load %arg2[%c0_6, %c0_7] : memref<128x256xf32, #tpu.memory_space<vmem>>, vector<128x256xf32>
    %c0_8 = arith.constant 0 : index
    %c0_9 = arith.constant 0 : index
    %9 = vector.load %arg1[%c0_8, %c0_9] : memref<64x128xf32, #tpu.memory_space<vmem>>, vector<64x128xf32>
    %cst = arith.constant dense<0.000000e+00> : vector<64x256xf32>
    %10 = tpu.matmul %9, %8, %cst {dimension_numbers = #tpu.dot_dimension_numbers<[1], [0], [0], [1], [0, 0, 1, 1], [], []>} : vector<64x128xf32>, vector<128x256xf32>, vector<64x256xf32> -> vector<64x256xf32>
    %c0_10 = arith.constant 0 : index
    %c0_11 = arith.constant 0 : index
    %11 = vector.load %arg3[%c0_10, %c0_11] : memref<1x256xf32, #tpu.memory_space<vmem>>, vector<1x256xf32>
    %12 = vector.shape_cast %11 : vector<1x256xf32> to vector<1x256xf32>
    %13 = vector.broadcast %12 : vector<1x256xf32> to vector<64x256xf32>
    %14 = arith.addf %10, %13 : vector<64x256xf32>
    %c0_12 = arith.constant 0 : index
    %c0_13 = arith.constant 0 : index
    %15 = vector.load %arg10[%c0_12, %c0_13] : memref<64x256xf32, #tpu.memory_space<vmem>>, vector<64x256xf32>
    tpu.vector_store %arg10[%c0_12, %c0_13], %14 {strides = array<i32>} : memref<64x256xf32, #tpu.memory_space<vmem>>, vector<64x256xf32>,
    %c0_14 = arith.constant 0 : index
    %c0_15 = arith.constant 0 : index
    %c0_16 = arith.constant 0 : index
    %16 = vector.load %arg11[%c0_14, %c0_15, %c0_16] : memref<4x8x64xf32, #tpu.memory_space<vmem>>, vector<1x8x64xf32>
    %17 = vector.shape_cast %16 : vector<1x8x64xf32> to vector<8x64xf32>
    %c1 = arith.constant 1 : index
    %c0_17 = arith.constant 0 : index
    %c0_18 = arith.constant 0 : index
    %18 = vector.load %arg11[%c1, %c0_17, %c0_18] : memref<4x8x64xf32, #tpu.memory_space<vmem>>, vector<1x8x64xf32>
    %19 = vector.shape_cast %18 : vector<1x8x64xf32> to vector<8x64xf32>
    %c2 = arith.constant 2 : index
    %c0_19 = arith.constant 0 : index
    %c0_20 = arith.constant 0 : index
    %20 = vector.load %arg11[%c2, %c0_19, %c0_20] : memref<4x8x64xf32, #tpu.memory_space<vmem>>, vector<1x8x64xf32>
    %21 = vector.shape_cast %20 : vector<1x8x64xf32> to vector<8x64xf32>
    %c3 = arith.constant 3 : index
    %c0_21 = arith.constant 0 : index
    %c0_22 = arith.constant 0 : index
    %22 = vector.load %arg11[%c3, %c0_21, %c0_22] : memref<4x8x64xf32, #tpu.memory_space<vmem>>, vector<1x8x64xf32>
    %23 = vector.shape_cast %22 : vector<1x8x64xf32> to vector<8x64xf32>
    %c0_i32_23 = arith.constant 0 : i32
    %c8_i32 = arith.constant 8 : i32
    %24 = arith.muli %c0_i32_23, %c8_i32 : i32
    %25 = tpu.assume_multiple %24, 8 : i32
    %26 = arith.index_cast %25 : i32 to index
    %c0_24 = arith.constant 0 : index
    %27 = vector.load %arg10[%26, %c0_24] : memref<64x256xf32, #tpu.memory_space<vmem>>, vector<8x256xf32>
    %cst_25 = arith.constant dense<0.000000e+00> : vector<8x256xf32>
    %28 = tpu.matmul %17, %3, %cst_25 {dimension_numbers = #tpu.dot_dimension_numbers<[1], [0], [0], [1], [0, 0, 1, 1], [], []>} : vector<8x64xf32>, vector<64x256xf32>, vector<8x256xf32> -> vector<8x256xf32>
    %29 = arith.addf %27, %28 : vector<8x256xf32>
    %30 = vector.extract_strided_slice %29 {offsets = [0, 0], sizes = [8, 64], strides = [1, 1]} : vector<8x256xf32> to vector<8x64xf32>
    %31 = arith.negf %30 : vector<8x64xf32>
    %32 = math.exp %31 : vector<8x64xf32>
    %cst_26 = arith.constant 1.000000e+00 : f32
    %33 = vector.broadcast %cst_26 : f32 to vector<8x64xf32>
    %34 = arith.addf %33, %32 : vector<8x64xf32>
    %35 = arith.divf %33, %34 : vector<8x64xf32>
    %36 = vector.extract_strided_slice %29 {offsets = [0, 64], sizes = [8, 64], strides = [1, 1]} : vector<8x256xf32> to vector<8x64xf32>
    %37 = arith.negf %36 : vector<8x64xf32>
    %38 = math.exp %37 : vector<8x64xf32>
    %cst_27 = arith.constant 1.000000e+00 : f32
    %39 = vector.broadcast %cst_27 : f32 to vector<8x64xf32>
    %40 = arith.addf %39, %38 : vector<8x64xf32>
    %41 = arith.divf %39, %40 : vector<8x64xf32>
    %42 = vector.extract_strided_slice %29 {offsets = [0, 128], sizes = [8, 64], strides = [1, 1]} : vector<8x256xf32> to vector<8x64xf32>
    %43 = math.tanh %42 : vector<8x64xf32>
    %44 = vector.extract_strided_slice %29 {offsets = [0, 192], sizes = [8, 64], strides = [1, 1]} : vector<8x256xf32> to vector<8x64xf32>
    %45 = arith.negf %44 : vector<8x64xf32>
    %46 = math.exp %45 : vector<8x64xf32>
    %cst_28 = arith.constant 1.000000e+00 : f32
    %47 = vector.broadcast %cst_28 : f32 to vector<8x64xf32>
    %48 = arith.addf %47, %46 : vector<8x64xf32>
    %49 = arith.divf %47, %48 : vector<8x64xf32>
    %50 = arith.mulf %41, %19 : vector<8x64xf32>
    %51 = arith.mulf %35, %43 : vector<8x64xf32>
    %52 = arith.addf %50, %51 : vector<8x64xf32>
    %53 = math.tanh %52 : vector<8x64xf32>
    %54 = arith.mulf %49, %53 : vector<8x64xf32>
    %55 = tpu.concatenate %54, %21 in 1 : vector<8x64xf32>, vector<8x64xf32> -> vector<8x128xf32>
    %cst_29 = arith.constant dense<0.000000e+00> : vector<8x256xf32>
    %56 = tpu.matmul %55, %4, %cst_29 {dimension_numbers = #tpu.dot_dimension_numbers<[1], [0], [0], [1], [0, 0, 1, 1], [], []>} : vector<8x128xf32>, vector<128x256xf32>, vector<8x256xf32> -> vector<8x256xf32>
    %57 = arith.addf %56, %7 : vector<8x256xf32>
    %58 = vector.extract_strided_slice %57 {offsets = [0, 0], sizes = [8, 64], strides = [1, 1]} : vector<8x256xf32> to vector<8x64xf32>
    %59 = arith.negf %58 : vector<8x64xf32>
    %60 = math.exp %59 : vector<8x64xf32>
    %cst_30 = arith.constant 1.000000e+00 : f32
    %61 = vector.broadcast %cst_30 : f32 to vector<8x64xf32>
    %62 = arith.addf %61, %60 : vector<8x64xf32>
    %63 = arith.divf %61, %62 : vector<8x64xf32>
    %64 = vector.extract_strided_slice %57 {offsets = [0, 64], sizes = [8, 64], strides = [1, 1]} : vector<8x256xf32> to vector<8x64xf32>
    %65 = arith.negf %64 : vector<8x64xf32>
    %66 = math.exp %65 : vector<8x64xf32>
    %cst_31 = arith.constant 1.000000e+00 : f32
    %67 = vector.broadcast %cst_31 : f32 to vector<8x64xf32>
    %68 = arith.addf %67, %66 : vector<8x64xf32>
    %69 = arith.divf %67, %68 : vector<8x64xf32>
    %70 = vector.extract_strided_slice %57 {offsets = [0, 128], sizes = [8, 64], strides = [1, 1]} : vector<8x256xf32> to vector<8x64xf32>
    %71 = math.tanh %70 : vector<8x64xf32>
    %72 = vector.extract_strided_slice %57 {offsets = [0, 192], sizes = [8, 64], strides = [1, 1]} : vector<8x256xf32> to vector<8x64xf32>
    %73 = arith.negf %72 : vector<8x64xf32>
    %74 = math.exp %73 : vector<8x64xf32>
    %cst_32 = arith.constant 1.000000e+00 : f32
    %75 = vector.broadcast %cst_32 : f32 to vector<8x64xf32>
    %76 = arith.addf %75, %74 : vector<8x64xf32>
    %77 = arith.divf %75, %76 : vector<8x64xf32>
    %78 = arith.mulf %69, %23 : vector<8x64xf32>
    %79 = arith.mulf %63, %71 : vector<8x64xf32>
    %80 = arith.addf %78, %79 : vector<8x64xf32>
    %81 = math.tanh %80 : vector<8x64xf32>
    %82 = arith.mulf %77, %81 : vector<8x64xf32>
    %c1_i32 = arith.constant 1 : i32
    %c8_i32_33 = arith.constant 8 : i32
    %83 = arith.muli %c1_i32, %c8_i32_33 : i32
    %84 = tpu.assume_multiple %83, 8 : i32
    %85 = arith.index_cast %84 : i32 to index
    %c0_34 = arith.constant 0 : index
    %86 = vector.load %arg10[%85, %c0_34] : memref<64x256xf32, #tpu.memory_space<vmem>>, vector<8x256xf32>
    %cst_35 = arith.constant dense<0.000000e+00> : vector<8x256xf32>
    %87 = tpu.matmul %54, %3, %cst_35 {dimension_numbers = #tpu.dot_dimension_numbers<[1], [0], [0], [1], [0, 0, 1, 1], [], []>} : vector<8x64xf32>, vector<64x256xf32>, vector<8x256xf32> -> vector<8x256xf32>
    %88 = arith.addf %86, %87 : vector<8x256xf32>
    %89 = vector.extract_strided_slice %88 {offsets = [0, 0], sizes = [8, 64], strides = [1, 1]} : vector<8x256xf32> to vector<8x64xf32>
    %90 = arith.negf %89 : vector<8x64xf32>
    %91 = math.exp %90 : vector<8x64xf32>
    %cst_36 = arith.constant 1.000000e+00 : f32
    %92 = vector.broadcast %cst_36 : f32 to vector<8x64xf32>
    %93 = arith.addf %92, %91 : vector<8x64xf32>
    %94 = arith.divf %92, %93 : vector<8x64xf32>
    %95 = vector.extract_strided_slice %88 {offsets = [0, 64], sizes = [8, 64], strides = [1, 1]} : vector<8x256xf32> to vector<8x64xf32>
    %96 = arith.negf %95 : vector<8x64xf32>
    %97 = math.exp %96 : vector<8x64xf32>
    %cst_37 = arith.constant 1.000000e+00 : f32
    %98 = vector.broadcast %cst_37 : f32 to vector<8x64xf32>
    %99 = arith.addf %98, %97 : vector<8x64xf32>
    %100 = arith.divf %98, %99 : vector<8x64xf32>
    %101 = vector.extract_strided_slice %88 {offsets = [0, 128], sizes = [8, 64], strides = [1, 1]} : vector<8x256xf32> to vector<8x64xf32>
    %102 = math.tanh %101 : vector<8x64xf32>
    %103 = vector.extract_strided_slice %88 {offsets = [0, 192], sizes = [8, 64], strides = [1, 1]} : vector<8x256xf32> to vector<8x64xf32>
    %104 = arith.negf %103 : vector<8x64xf32>
    %105 = math.exp %104 : vector<8x64xf32>
    %cst_38 = arith.constant 1.000000e+00 : f32
    %106 = vector.broadcast %cst_38 : f32 to vector<8x64xf32>
    %107 = arith.addf %106, %105 : vector<8x64xf32>
    %108 = arith.divf %106, %107 : vector<8x64xf32>
    %109 = arith.mulf %100, %52 : vector<8x64xf32>
    %110 = arith.mulf %94, %102 : vector<8x64xf32>
    %111 = arith.addf %109, %110 : vector<8x64xf32>
    %112 = math.tanh %111 : vector<8x64xf32>
    %113 = arith.mulf %108, %112 : vector<8x64xf32>
    %114 = tpu.concatenate %113, %82 in 1 : vector<8x64xf32>, vector<8x64xf32> -> vector<8x128xf32>
    %cst_39 = arith.constant dense<0.000000e+00> : vector<8x256xf32>
    %115 = tpu.matmul %114, %4, %cst_39 {dimension_numbers = #tpu.dot_dimension_numbers<[1], [0], [0], [1], [0, 0, 1, 1], [], []>} : vector<8x128xf32>, vector<128x256xf32>, vector<8x256xf32> -> vector<8x256xf32>
    %116 = arith.addf %115, %7 : vector<8x256xf32>
    %117 = vector.extract_strided_slice %116 {offsets = [0, 0], sizes = [8, 64], strides = [1, 1]} : vector<8x256xf32> to vector<8x64xf32>
    %118 = arith.negf %117 : vector<8x64xf32>
    %119 = math.exp %118 : vector<8x64xf32>
    %cst_40 = arith.constant 1.000000e+00 : f32
    %120 = vector.broadcast %cst_40 : f32 to vector<8x64xf32>
    %121 = arith.addf %120, %119 : vector<8x64xf32>
    %122 = arith.divf %120, %121 : vector<8x64xf32>
    %123 = vector.extract_strided_slice %116 {offsets = [0, 64], sizes = [8, 64], strides = [1, 1]} : vector<8x256xf32> to vector<8x64xf32>
    %124 = arith.negf %123 : vector<8x64xf32>
    %125 = math.exp %124 : vector<8x64xf32>
    %cst_41 = arith.constant 1.000000e+00 : f32
    %126 = vector.broadcast %cst_41 : f32 to vector<8x64xf32>
    %127 = arith.addf %126, %125 : vector<8x64xf32>
    %128 = arith.divf %126, %127 : vector<8x64xf32>
    %129 = vector.extract_strided_slice %116 {offsets = [0, 128], sizes = [8, 64], strides = [1, 1]} : vector<8x256xf32> to vector<8x64xf32>
    %130 = math.tanh %129 : vector<8x64xf32>
    %131 = vector.extract_strided_slice %116 {offsets = [0, 192], sizes = [8, 64], strides = [1, 1]} : vector<8x256xf32> to vector<8x64xf32>
    %132 = arith.negf %131 : vector<8x64xf32>
    %133 = math.exp %132 : vector<8x64xf32>
    %cst_42 = arith.constant 1.000000e+00 : f32
    %134 = vector.broadcast %cst_42 : f32 to vector<8x64xf32>
    %135 = arith.addf %134, %133 : vector<8x64xf32>
    %136 = arith.divf %134, %135 : vector<8x64xf32>
    %137 = arith.mulf %128, %80 : vector<8x64xf32>
    %138 = arith.mulf %122, %130 : vector<8x64xf32>
    %139 = arith.addf %137, %138 : vector<8x64xf32>
    %140 = math.tanh %139 : vector<8x64xf32>
    %141 = arith.mulf %136, %140 : vector<8x64xf32>
    %c2_i32 = arith.constant 2 : i32
    %c8_i32_43 = arith.constant 8 : i32
    %142 = arith.muli %c2_i32, %c8_i32_43 : i32
    %143 = tpu.assume_multiple %142, 8 : i32
    %144 = arith.index_cast %143 : i32 to index
    %c0_44 = arith.constant 0 : index
    %145 = vector.load %arg10[%144, %c0_44] : memref<64x256xf32, #tpu.memory_space<vmem>>, vector<8x256xf32>
    %cst_45 = arith.constant dense<0.000000e+00> : vector<8x256xf32>
    %146 = tpu.matmul %113, %3, %cst_45 {dimension_numbers = #tpu.dot_dimension_numbers<[1], [0], [0], [1], [0, 0, 1, 1], [], []>} : vector<8x64xf32>, vector<64x256xf32>, vector<8x256xf32> -> vector<8x256xf32>
    %147 = arith.addf %145, %146 : vector<8x256xf32>
    %148 = vector.extract_strided_slice %147 {offsets = [0, 0], sizes = [8, 64], strides = [1, 1]} : vector<8x256xf32> to vector<8x64xf32>
    %149 = arith.negf %148 : vector<8x64xf32>
    %150 = math.exp %149 : vector<8x64xf32>
    %cst_46 = arith.constant 1.000000e+00 : f32
    %151 = vector.broadcast %cst_46 : f32 to vector<8x64xf32>
    %152 = arith.addf %151, %150 : vector<8x64xf32>
    %153 = arith.divf %151, %152 : vector<8x64xf32>
    %154 = vector.extract_strided_slice %147 {offsets = [0, 64], sizes = [8, 64], strides = [1, 1]} : vector<8x256xf32> to vector<8x64xf32>
    %155 = arith.negf %154 : vector<8x64xf32>
    %156 = math.exp %155 : vector<8x64xf32>
    %cst_47 = arith.constant 1.000000e+00 : f32
    %157 = vector.broadcast %cst_47 : f32 to vector<8x64xf32>
    %158 = arith.addf %157, %156 : vector<8x64xf32>
    %159 = arith.divf %157, %158 : vector<8x64xf32>
    %160 = vector.extract_strided_slice %147 {offsets = [0, 128], sizes = [8, 64], strides = [1, 1]} : vector<8x256xf32> to vector<8x64xf32>
    %161 = math.tanh %160 : vector<8x64xf32>
    %162 = vector.extract_strided_slice %147 {offsets = [0, 192], sizes = [8, 64], strides = [1, 1]} : vector<8x256xf32> to vector<8x64xf32>
    %163 = arith.negf %162 : vector<8x64xf32>
    %164 = math.exp %163 : vector<8x64xf32>
    %cst_48 = arith.constant 1.000000e+00 : f32
    %165 = vector.broadcast %cst_48 : f32 to vector<8x64xf32>
    %166 = arith.addf %165, %164 : vector<8x64xf32>
    %167 = arith.divf %165, %166 : vector<8x64xf32>
    %168 = arith.mulf %159, %111 : vector<8x64xf32>
    %169 = arith.mulf %153, %161 : vector<8x64xf32>
    %170 = arith.addf %168, %169 : vector<8x64xf32>
    %171 = math.tanh %170 : vector<8x64xf32>
    %172 = arith.mulf %167, %171 : vector<8x64xf32>
    %173 = tpu.concatenate %172, %141 in 1 : vector<8x64xf32>, vector<8x64xf32> -> vector<8x128xf32>
    %cst_49 = arith.constant dense<0.000000e+00> : vector<8x256xf32>
    %174 = tpu.matmul %173, %4, %cst_49 {dimension_numbers = #tpu.dot_dimension_numbers<[1], [0], [0], [1], [0, 0, 1, 1], [], []>} : vector<8x128xf32>, vector<128x256xf32>, vector<8x256xf32> -> vector<8x256xf32>
    %175 = arith.addf %174, %7 : vector<8x256xf32>
    %176 = vector.extract_strided_slice %175 {offsets = [0, 0], sizes = [8, 64], strides = [1, 1]} : vector<8x256xf32> to vector<8x64xf32>
    %177 = arith.negf %176 : vector<8x64xf32>
    %178 = math.exp %177 : vector<8x64xf32>
    %cst_50 = arith.constant 1.000000e+00 : f32
    %179 = vector.broadcast %cst_50 : f32 to vector<8x64xf32>
    %180 = arith.addf %179, %178 : vector<8x64xf32>
    %181 = arith.divf %179, %180 : vector<8x64xf32>
    %182 = vector.extract_strided_slice %175 {offsets = [0, 64], sizes = [8, 64], strides = [1, 1]} : vector<8x256xf32> to vector<8x64xf32>
    %183 = arith.negf %182 : vector<8x64xf32>
    %184 = math.exp %183 : vector<8x64xf32>
    %cst_51 = arith.constant 1.000000e+00 : f32
    %185 = vector.broadcast %cst_51 : f32 to vector<8x64xf32>
    %186 = arith.addf %185, %184 : vector<8x64xf32>
    %187 = arith.divf %185, %186 : vector<8x64xf32>
    %188 = vector.extract_strided_slice %175 {offsets = [0, 128], sizes = [8, 64], strides = [1, 1]} : vector<8x256xf32> to vector<8x64xf32>
    %189 = math.tanh %188 : vector<8x64xf32>
    %190 = vector.extract_strided_slice %175 {offsets = [0, 192], sizes = [8, 64], strides = [1, 1]} : vector<8x256xf32> to vector<8x64xf32>
    %191 = arith.negf %190 : vector<8x64xf32>
    %192 = math.exp %191 : vector<8x64xf32>
    %cst_52 = arith.constant 1.000000e+00 : f32
    %193 = vector.broadcast %cst_52 : f32 to vector<8x64xf32>
    %194 = arith.addf %193, %192 : vector<8x64xf32>
    %195 = arith.divf %193, %194 : vector<8x64xf32>
    %196 = arith.mulf %187, %139 : vector<8x64xf32>
    %197 = arith.mulf %181, %189 : vector<8x64xf32>
    %198 = arith.addf %196, %197 : vector<8x64xf32>
    %199 = math.tanh %198 : vector<8x64xf32>
    %200 = arith.mulf %195, %199 : vector<8x64xf32>
    %c3_i32 = arith.constant 3 : i32
    %c8_i32_53 = arith.constant 8 : i32
    %201 = arith.muli %c3_i32, %c8_i32_53 : i32
    %202 = tpu.assume_multiple %201, 8 : i32
    %203 = arith.index_cast %202 : i32 to index
    %c0_54 = arith.constant 0 : index
    %204 = vector.load %arg10[%203, %c0_54] : memref<64x256xf32, #tpu.memory_space<vmem>>, vector<8x256xf32>
    %cst_55 = arith.constant dense<0.000000e+00> : vector<8x256xf32>
    %205 = tpu.matmul %172, %3, %cst_55 {dimension_numbers = #tpu.dot_dimension_numbers<[1], [0], [0], [1], [0, 0, 1, 1], [], []>} : vector<8x64xf32>, vector<64x256xf32>, vector<8x256xf32> -> vector<8x256xf32>
    %206 = arith.addf %204, %205 : vector<8x256xf32>
    %207 = vector.extract_strided_slice %206 {offsets = [0, 0], sizes = [8, 64], strides = [1, 1]} : vector<8x256xf32> to vector<8x64xf32>
    %208 = arith.negf %207 : vector<8x64xf32>
    %209 = math.exp %208 : vector<8x64xf32>
    %cst_56 = arith.constant 1.000000e+00 : f32
    %210 = vector.broadcast %cst_56 : f32 to vector<8x64xf32>
    %211 = arith.addf %210, %209 : vector<8x64xf32>
    %212 = arith.divf %210, %211 : vector<8x64xf32>
    %213 = vector.extract_strided_slice %206 {offsets = [0, 64], sizes = [8, 64], strides = [1, 1]} : vector<8x256xf32> to vector<8x64xf32>
    %214 = arith.negf %213 : vector<8x64xf32>
    %215 = math.exp %214 : vector<8x64xf32>
    %cst_57 = arith.constant 1.000000e+00 : f32
    %216 = vector.broadcast %cst_57 : f32 to vector<8x64xf32>
    %217 = arith.addf %216, %215 : vector<8x64xf32>
    %218 = arith.divf %216, %217 : vector<8x64xf32>
    %219 = vector.extract_strided_slice %206 {offsets = [0, 128], sizes = [8, 64], strides = [1, 1]} : vector<8x256xf32> to vector<8x64xf32>
    %220 = math.tanh %219 : vector<8x64xf32>
    %221 = vector.extract_strided_slice %206 {offsets = [0, 192], sizes = [8, 64], strides = [1, 1]} : vector<8x256xf32> to vector<8x64xf32>
    %222 = arith.negf %221 : vector<8x64xf32>
    %223 = math.exp %222 : vector<8x64xf32>
    %cst_58 = arith.constant 1.000000e+00 : f32
    %224 = vector.broadcast %cst_58 : f32 to vector<8x64xf32>
    %225 = arith.addf %224, %223 : vector<8x64xf32>
    %226 = arith.divf %224, %225 : vector<8x64xf32>
    %227 = arith.mulf %218, %170 : vector<8x64xf32>
    %228 = arith.mulf %212, %220 : vector<8x64xf32>
    %229 = arith.addf %227, %228 : vector<8x64xf32>
    %230 = math.tanh %229 : vector<8x64xf32>
    %231 = arith.mulf %226, %230 : vector<8x64xf32>
    %232 = tpu.concatenate %231, %200 in 1 : vector<8x64xf32>, vector<8x64xf32> -> vector<8x128xf32>
    %cst_59 = arith.constant dense<0.000000e+00> : vector<8x256xf32>
    %233 = tpu.matmul %232, %4, %cst_59 {dimension_numbers = #tpu.dot_dimension_numbers<[1], [0], [0], [1], [0, 0, 1, 1], [], []>} : vector<8x128xf32>, vector<128x256xf32>, vector<8x256xf32> -> vector<8x256xf32>
    %234 = arith.addf %233, %7 : vector<8x256xf32>
    %235 = vector.extract_strided_slice %234 {offsets = [0, 0], sizes = [8, 64], strides = [1, 1]} : vector<8x256xf32> to vector<8x64xf32>
    %236 = arith.negf %235 : vector<8x64xf32>
    %237 = math.exp %236 : vector<8x64xf32>
    %cst_60 = arith.constant 1.000000e+00 : f32
    %238 = vector.broadcast %cst_60 : f32 to vector<8x64xf32>
    %239 = arith.addf %238, %237 : vector<8x64xf32>
    %240 = arith.divf %238, %239 : vector<8x64xf32>
    %241 = vector.extract_strided_slice %234 {offsets = [0, 64], sizes = [8, 64], strides = [1, 1]} : vector<8x256xf32> to vector<8x64xf32>
    %242 = arith.negf %241 : vector<8x64xf32>
    %243 = math.exp %242 : vector<8x64xf32>
    %cst_61 = arith.constant 1.000000e+00 : f32
    %244 = vector.broadcast %cst_61 : f32 to vector<8x64xf32>
    %245 = arith.addf %244, %243 : vector<8x64xf32>
    %246 = arith.divf %244, %245 : vector<8x64xf32>
    %247 = vector.extract_strided_slice %234 {offsets = [0, 128], sizes = [8, 64], strides = [1, 1]} : vector<8x256xf32> to vector<8x64xf32>
    %248 = math.tanh %247 : vector<8x64xf32>
    %249 = vector.extract_strided_slice %234 {offsets = [0, 192], sizes = [8, 64], strides = [1, 1]} : vector<8x256xf32> to vector<8x64xf32>
    %250 = arith.negf %249 : vector<8x64xf32>
    %251 = math.exp %250 : vector<8x64xf32>
    %cst_62 = arith.constant 1.000000e+00 : f32
    %252 = vector.broadcast %cst_62 : f32 to vector<8x64xf32>
    %253 = arith.addf %252, %251 : vector<8x64xf32>
    %254 = arith.divf %252, %253 : vector<8x64xf32>
    %255 = arith.mulf %246, %198 : vector<8x64xf32>
    %256 = arith.mulf %240, %248 : vector<8x64xf32>
    %257 = arith.addf %255, %256 : vector<8x64xf32>
    %258 = math.tanh %257 : vector<8x64xf32>
    %259 = arith.mulf %254, %258 : vector<8x64xf32>
    %c4_i32 = arith.constant 4 : i32
    %c8_i32_63 = arith.constant 8 : i32
    %260 = arith.muli %c4_i32, %c8_i32_63 : i32
    %261 = tpu.assume_multiple %260, 8 : i32
    %262 = arith.index_cast %261 : i32 to index
    %c0_64 = arith.constant 0 : index
    %263 = vector.load %arg10[%262, %c0_64] : memref<64x256xf32, #tpu.memory_space<vmem>>, vector<8x256xf32>
    %cst_65 = arith.constant dense<0.000000e+00> : vector<8x256xf32>
    %264 = tpu.matmul %231, %3, %cst_65 {dimension_numbers = #tpu.dot_dimension_numbers<[1], [0], [0], [1], [0, 0, 1, 1], [], []>} : vector<8x64xf32>, vector<64x256xf32>, vector<8x256xf32> -> vector<8x256xf32>
    %265 = arith.addf %263, %264 : vector<8x256xf32>
    %266 = vector.extract_strided_slice %265 {offsets = [0, 0], sizes = [8, 64], strides = [1, 1]} : vector<8x256xf32> to vector<8x64xf32>
    %267 = arith.negf %266 : vector<8x64xf32>
    %268 = math.exp %267 : vector<8x64xf32>
    %cst_66 = arith.constant 1.000000e+00 : f32
    %269 = vector.broadcast %cst_66 : f32 to vector<8x64xf32>
    %270 = arith.addf %269, %268 : vector<8x64xf32>
    %271 = arith.divf %269, %270 : vector<8x64xf32>
    %272 = vector.extract_strided_slice %265 {offsets = [0, 64], sizes = [8, 64], strides = [1, 1]} : vector<8x256xf32> to vector<8x64xf32>
    %273 = arith.negf %272 : vector<8x64xf32>
    %274 = math.exp %273 : vector<8x64xf32>
    %cst_67 = arith.constant 1.000000e+00 : f32
    %275 = vector.broadcast %cst_67 : f32 to vector<8x64xf32>
    %276 = arith.addf %275, %274 : vector<8x64xf32>
    %277 = arith.divf %275, %276 : vector<8x64xf32>
    %278 = vector.extract_strided_slice %265 {offsets = [0, 128], sizes = [8, 64], strides = [1, 1]} : vector<8x256xf32> to vector<8x64xf32>
    %279 = math.tanh %278 : vector<8x64xf32>
    %280 = vector.extract_strided_slice %265 {offsets = [0, 192], sizes = [8, 64], strides = [1, 1]} : vector<8x256xf32> to vector<8x64xf32>
    %281 = arith.negf %280 : vector<8x64xf32>
    %282 = math.exp %281 : vector<8x64xf32>
    %cst_68 = arith.constant 1.000000e+00 : f32
    %283 = vector.broadcast %cst_68 : f32 to vector<8x64xf32>
    %284 = arith.addf %283, %282 : vector<8x64xf32>
    %285 = arith.divf %283, %284 : vector<8x64xf32>
    %286 = arith.mulf %277, %229 : vector<8x64xf32>
    %287 = arith.mulf %271, %279 : vector<8x64xf32>
    %288 = arith.addf %286, %287 : vector<8x64xf32>
    %289 = math.tanh %288 : vector<8x64xf32>
    %290 = arith.mulf %285, %289 : vector<8x64xf32>
    %291 = tpu.concatenate %290, %259 in 1 : vector<8x64xf32>, vector<8x64xf32> -> vector<8x128xf32>
    %cst_69 = arith.constant dense<0.000000e+00> : vector<8x256xf32>
    %292 = tpu.matmul %291, %4, %cst_69 {dimension_numbers = #tpu.dot_dimension_numbers<[1], [0], [0], [1], [0, 0, 1, 1], [], []>} : vector<8x128xf32>, vector<128x256xf32>, vector<8x256xf32> -> vector<8x256xf32>
    %293 = arith.addf %292, %7 : vector<8x256xf32>
    %294 = vector.extract_strided_slice %293 {offsets = [0, 0], sizes = [8, 64], strides = [1, 1]} : vector<8x256xf32> to vector<8x64xf32>
    %295 = arith.negf %294 : vector<8x64xf32>
    %296 = math.exp %295 : vector<8x64xf32>
    %cst_70 = arith.constant 1.000000e+00 : f32
    %297 = vector.broadcast %cst_70 : f32 to vector<8x64xf32>
    %298 = arith.addf %297, %296 : vector<8x64xf32>
    %299 = arith.divf %297, %298 : vector<8x64xf32>
    %300 = vector.extract_strided_slice %293 {offsets = [0, 64], sizes = [8, 64], strides = [1, 1]} : vector<8x256xf32> to vector<8x64xf32>
    %301 = arith.negf %300 : vector<8x64xf32>
    %302 = math.exp %301 : vector<8x64xf32>
    %cst_71 = arith.constant 1.000000e+00 : f32
    %303 = vector.broadcast %cst_71 : f32 to vector<8x64xf32>
    %304 = arith.addf %303, %302 : vector<8x64xf32>
    %305 = arith.divf %303, %304 : vector<8x64xf32>
    %306 = vector.extract_strided_slice %293 {offsets = [0, 128], sizes = [8, 64], strides = [1, 1]} : vector<8x256xf32> to vector<8x64xf32>
    %307 = math.tanh %306 : vector<8x64xf32>
    %308 = vector.extract_strided_slice %293 {offsets = [0, 192], sizes = [8, 64], strides = [1, 1]} : vector<8x256xf32> to vector<8x64xf32>
    %309 = arith.negf %308 : vector<8x64xf32>
    %310 = math.exp %309 : vector<8x64xf32>
    %cst_72 = arith.constant 1.000000e+00 : f32
    %311 = vector.broadcast %cst_72 : f32 to vector<8x64xf32>
    %312 = arith.addf %311, %310 : vector<8x64xf32>
    %313 = arith.divf %311, %312 : vector<8x64xf32>
    %314 = arith.mulf %305, %257 : vector<8x64xf32>
    %315 = arith.mulf %299, %307 : vector<8x64xf32>
    %316 = arith.addf %314, %315 : vector<8x64xf32>
    %317 = math.tanh %316 : vector<8x64xf32>
    %318 = arith.mulf %313, %317 : vector<8x64xf32>
    %c5_i32 = arith.constant 5 : i32
    %c8_i32_73 = arith.constant 8 : i32
    %319 = arith.muli %c5_i32, %c8_i32_73 : i32
    %320 = tpu.assume_multiple %319, 8 : i32
    %321 = arith.index_cast %320 : i32 to index
    %c0_74 = arith.constant 0 : index
    %322 = vector.load %arg10[%321, %c0_74] : memref<64x256xf32, #tpu.memory_space<vmem>>, vector<8x256xf32>
    %cst_75 = arith.constant dense<0.000000e+00> : vector<8x256xf32>
    %323 = tpu.matmul %290, %3, %cst_75 {dimension_numbers = #tpu.dot_dimension_numbers<[1], [0], [0], [1], [0, 0, 1, 1], [], []>} : vector<8x64xf32>, vector<64x256xf32>, vector<8x256xf32> -> vector<8x256xf32>
    %324 = arith.addf %322, %323 : vector<8x256xf32>
    %325 = vector.extract_strided_slice %324 {offsets = [0, 0], sizes = [8, 64], strides = [1, 1]} : vector<8x256xf32> to vector<8x64xf32>
    %326 = arith.negf %325 : vector<8x64xf32>
    %327 = math.exp %326 : vector<8x64xf32>
    %cst_76 = arith.constant 1.000000e+00 : f32
    %328 = vector.broadcast %cst_76 : f32 to vector<8x64xf32>
    %329 = arith.addf %328, %327 : vector<8x64xf32>
    %330 = arith.divf %328, %329 : vector<8x64xf32>
    %331 = vector.extract_strided_slice %324 {offsets = [0, 64], sizes = [8, 64], strides = [1, 1]} : vector<8x256xf32> to vector<8x64xf32>
    %332 = arith.negf %331 : vector<8x64xf32>
    %333 = math.exp %332 : vector<8x64xf32>
    %cst_77 = arith.constant 1.000000e+00 : f32
    %334 = vector.broadcast %cst_77 : f32 to vector<8x64xf32>
    %335 = arith.addf %334, %333 : vector<8x64xf32>
    %336 = arith.divf %334, %335 : vector<8x64xf32>
    %337 = vector.extract_strided_slice %324 {offsets = [0, 128], sizes = [8, 64], strides = [1, 1]} : vector<8x256xf32> to vector<8x64xf32>
    %338 = math.tanh %337 : vector<8x64xf32>
    %339 = vector.extract_strided_slice %324 {offsets = [0, 192], sizes = [8, 64], strides = [1, 1]} : vector<8x256xf32> to vector<8x64xf32>
    %340 = arith.negf %339 : vector<8x64xf32>
    %341 = math.exp %340 : vector<8x64xf32>
    %cst_78 = arith.constant 1.000000e+00 : f32
    %342 = vector.broadcast %cst_78 : f32 to vector<8x64xf32>
    %343 = arith.addf %342, %341 : vector<8x64xf32>
    %344 = arith.divf %342, %343 : vector<8x64xf32>
    %345 = arith.mulf %336, %288 : vector<8x64xf32>
    %346 = arith.mulf %330, %338 : vector<8x64xf32>
    %347 = arith.addf %345, %346 : vector<8x64xf32>
    %348 = math.tanh %347 : vector<8x64xf32>
    %349 = arith.mulf %344, %348 : vector<8x64xf32>
    %350 = tpu.concatenate %349, %318 in 1 : vector<8x64xf32>, vector<8x64xf32> -> vector<8x128xf32>
    %cst_79 = arith.constant dense<0.000000e+00> : vector<8x256xf32>
    %351 = tpu.matmul %350, %4, %cst_79 {dimension_numbers = #tpu.dot_dimension_numbers<[1], [0], [0], [1], [0, 0, 1, 1], [], []>} : vector<8x128xf32>, vector<128x256xf32>, vector<8x256xf32> -> vector<8x256xf32>
    %352 = arith.addf %351, %7 : vector<8x256xf32>
    %353 = vector.extract_strided_slice %352 {offsets = [0, 0], sizes = [8, 64], strides = [1, 1]} : vector<8x256xf32> to vector<8x64xf32>
    %354 = arith.negf %353 : vector<8x64xf32>
    %355 = math.exp %354 : vector<8x64xf32>
    %cst_80 = arith.constant 1.000000e+00 : f32
    %356 = vector.broadcast %cst_80 : f32 to vector<8x64xf32>
    %357 = arith.addf %356, %355 : vector<8x64xf32>
    %358 = arith.divf %356, %357 : vector<8x64xf32>
    %359 = vector.extract_strided_slice %352 {offsets = [0, 64], sizes = [8, 64], strides = [1, 1]} : vector<8x256xf32> to vector<8x64xf32>
    %360 = arith.negf %359 : vector<8x64xf32>
    %361 = math.exp %360 : vector<8x64xf32>
    %cst_81 = arith.constant 1.000000e+00 : f32
    %362 = vector.broadcast %cst_81 : f32 to vector<8x64xf32>
    %363 = arith.addf %362, %361 : vector<8x64xf32>
    %364 = arith.divf %362, %363 : vector<8x64xf32>
    %365 = vector.extract_strided_slice %352 {offsets = [0, 128], sizes = [8, 64], strides = [1, 1]} : vector<8x256xf32> to vector<8x64xf32>
    %366 = math.tanh %365 : vector<8x64xf32>
    %367 = vector.extract_strided_slice %352 {offsets = [0, 192], sizes = [8, 64], strides = [1, 1]} : vector<8x256xf32> to vector<8x64xf32>
    %368 = arith.negf %367 : vector<8x64xf32>
    %369 = math.exp %368 : vector<8x64xf32>
    %cst_82 = arith.constant 1.000000e+00 : f32
    %370 = vector.broadcast %cst_82 : f32 to vector<8x64xf32>
    %371 = arith.addf %370, %369 : vector<8x64xf32>
    %372 = arith.divf %370, %371 : vector<8x64xf32>
    %373 = arith.mulf %364, %316 : vector<8x64xf32>
    %374 = arith.mulf %358, %366 : vector<8x64xf32>
    %375 = arith.addf %373, %374 : vector<8x64xf32>
    %376 = math.tanh %375 : vector<8x64xf32>
    %377 = arith.mulf %372, %376 : vector<8x64xf32>
    %c6_i32 = arith.constant 6 : i32
    %c8_i32_83 = arith.constant 8 : i32
    %378 = arith.muli %c6_i32, %c8_i32_83 : i32
    %379 = tpu.assume_multiple %378, 8 : i32
    %380 = arith.index_cast %379 : i32 to index
    %c0_84 = arith.constant 0 : index
    %381 = vector.load %arg10[%380, %c0_84] : memref<64x256xf32, #tpu.memory_space<vmem>>, vector<8x256xf32>
    %cst_85 = arith.constant dense<0.000000e+00> : vector<8x256xf32>
    %382 = tpu.matmul %349, %3, %cst_85 {dimension_numbers = #tpu.dot_dimension_numbers<[1], [0], [0], [1], [0, 0, 1, 1], [], []>} : vector<8x64xf32>, vector<64x256xf32>, vector<8x256xf32> -> vector<8x256xf32>
    %383 = arith.addf %381, %382 : vector<8x256xf32>
    %384 = vector.extract_strided_slice %383 {offsets = [0, 0], sizes = [8, 64], strides = [1, 1]} : vector<8x256xf32> to vector<8x64xf32>
    %385 = arith.negf %384 : vector<8x64xf32>
    %386 = math.exp %385 : vector<8x64xf32>
    %cst_86 = arith.constant 1.000000e+00 : f32
    %387 = vector.broadcast %cst_86 : f32 to vector<8x64xf32>
    %388 = arith.addf %387, %386 : vector<8x64xf32>
    %389 = arith.divf %387, %388 : vector<8x64xf32>
    %390 = vector.extract_strided_slice %383 {offsets = [0, 64], sizes = [8, 64], strides = [1, 1]} : vector<8x256xf32> to vector<8x64xf32>
    %391 = arith.negf %390 : vector<8x64xf32>
    %392 = math.exp %391 : vector<8x64xf32>
    %cst_87 = arith.constant 1.000000e+00 : f32
    %393 = vector.broadcast %cst_87 : f32 to vector<8x64xf32>
    %394 = arith.addf %393, %392 : vector<8x64xf32>
    %395 = arith.divf %393, %394 : vector<8x64xf32>
    %396 = vector.extract_strided_slice %383 {offsets = [0, 128], sizes = [8, 64], strides = [1, 1]} : vector<8x256xf32> to vector<8x64xf32>
    %397 = math.tanh %396 : vector<8x64xf32>
    %398 = vector.extract_strided_slice %383 {offsets = [0, 192], sizes = [8, 64], strides = [1, 1]} : vector<8x256xf32> to vector<8x64xf32>
    %399 = arith.negf %398 : vector<8x64xf32>
    %400 = math.exp %399 : vector<8x64xf32>
    %cst_88 = arith.constant 1.000000e+00 : f32
    %401 = vector.broadcast %cst_88 : f32 to vector<8x64xf32>
    %402 = arith.addf %401, %400 : vector<8x64xf32>
    %403 = arith.divf %401, %402 : vector<8x64xf32>
    %404 = arith.mulf %395, %347 : vector<8x64xf32>
    %405 = arith.mulf %389, %397 : vector<8x64xf32>
    %406 = arith.addf %404, %405 : vector<8x64xf32>
    %407 = math.tanh %406 : vector<8x64xf32>
    %408 = arith.mulf %403, %407 : vector<8x64xf32>
    %409 = tpu.concatenate %408, %377 in 1 : vector<8x64xf32>, vector<8x64xf32> -> vector<8x128xf32>
    %cst_89 = arith.constant dense<0.000000e+00> : vector<8x256xf32>
    %410 = tpu.matmul %409, %4, %cst_89 {dimension_numbers = #tpu.dot_dimension_numbers<[1], [0], [0], [1], [0, 0, 1, 1], [], []>} : vector<8x128xf32>, vector<128x256xf32>, vector<8x256xf32> -> vector<8x256xf32>
    %411 = arith.addf %410, %7 : vector<8x256xf32>
    %412 = vector.extract_strided_slice %411 {offsets = [0, 0], sizes = [8, 64], strides = [1, 1]} : vector<8x256xf32> to vector<8x64xf32>
    %413 = arith.negf %412 : vector<8x64xf32>
    %414 = math.exp %413 : vector<8x64xf32>
    %cst_90 = arith.constant 1.000000e+00 : f32
    %415 = vector.broadcast %cst_90 : f32 to vector<8x64xf32>
    %416 = arith.addf %415, %414 : vector<8x64xf32>
    %417 = arith.divf %415, %416 : vector<8x64xf32>
    %418 = vector.extract_strided_slice %411 {offsets = [0, 64], sizes = [8, 64], strides = [1, 1]} : vector<8x256xf32> to vector<8x64xf32>
    %419 = arith.negf %418 : vector<8x64xf32>
    %420 = math.exp %419 : vector<8x64xf32>
    %cst_91 = arith.constant 1.000000e+00 : f32
    %421 = vector.broadcast %cst_91 : f32 to vector<8x64xf32>
    %422 = arith.addf %421, %420 : vector<8x64xf32>
    %423 = arith.divf %421, %422 : vector<8x64xf32>
    %424 = vector.extract_strided_slice %411 {offsets = [0, 128], sizes = [8, 64], strides = [1, 1]} : vector<8x256xf32> to vector<8x64xf32>
    %425 = math.tanh %424 : vector<8x64xf32>
    %426 = vector.extract_strided_slice %411 {offsets = [0, 192], sizes = [8, 64], strides = [1, 1]} : vector<8x256xf32> to vector<8x64xf32>
    %427 = arith.negf %426 : vector<8x64xf32>
    %428 = math.exp %427 : vector<8x64xf32>
    %cst_92 = arith.constant 1.000000e+00 : f32
    %429 = vector.broadcast %cst_92 : f32 to vector<8x64xf32>
    %430 = arith.addf %429, %428 : vector<8x64xf32>
    %431 = arith.divf %429, %430 : vector<8x64xf32>
    %432 = arith.mulf %423, %375 : vector<8x64xf32>
    %433 = arith.mulf %417, %425 : vector<8x64xf32>
    %434 = arith.addf %432, %433 : vector<8x64xf32>
    %435 = math.tanh %434 : vector<8x64xf32>
    %436 = arith.mulf %431, %435 : vector<8x64xf32>
    %c7_i32 = arith.constant 7 : i32
    %c8_i32_93 = arith.constant 8 : i32
    %437 = arith.muli %c7_i32, %c8_i32_93 : i32
    %438 = tpu.assume_multiple %437, 8 : i32
    %439 = arith.index_cast %438 : i32 to index
    %c0_94 = arith.constant 0 : index
    %440 = vector.load %arg10[%439, %c0_94] : memref<64x256xf32, #tpu.memory_space<vmem>>, vector<8x256xf32>
    %cst_95 = arith.constant dense<0.000000e+00> : vector<8x256xf32>
    %441 = tpu.matmul %408, %3, %cst_95 {dimension_numbers = #tpu.dot_dimension_numbers<[1], [0], [0], [1], [0, 0, 1, 1], [], []>} : vector<8x64xf32>, vector<64x256xf32>, vector<8x256xf32> -> vector<8x256xf32>
    %442 = arith.addf %440, %441 : vector<8x256xf32>
    %443 = vector.extract_strided_slice %442 {offsets = [0, 0], sizes = [8, 64], strides = [1, 1]} : vector<8x256xf32> to vector<8x64xf32>
    %444 = arith.negf %443 : vector<8x64xf32>
    %445 = math.exp %444 : vector<8x64xf32>
    %cst_96 = arith.constant 1.000000e+00 : f32
    %446 = vector.broadcast %cst_96 : f32 to vector<8x64xf32>
    %447 = arith.addf %446, %445 : vector<8x64xf32>
    %448 = arith.divf %446, %447 : vector<8x64xf32>
    %449 = vector.extract_strided_slice %442 {offsets = [0, 64], sizes = [8, 64], strides = [1, 1]} : vector<8x256xf32> to vector<8x64xf32>
    %450 = arith.negf %449 : vector<8x64xf32>
    %451 = math.exp %450 : vector<8x64xf32>
    %cst_97 = arith.constant 1.000000e+00 : f32
    %452 = vector.broadcast %cst_97 : f32 to vector<8x64xf32>
    %453 = arith.addf %452, %451 : vector<8x64xf32>
    %454 = arith.divf %452, %453 : vector<8x64xf32>
    %455 = vector.extract_strided_slice %442 {offsets = [0, 128], sizes = [8, 64], strides = [1, 1]} : vector<8x256xf32> to vector<8x64xf32>
    %456 = math.tanh %455 : vector<8x64xf32>
    %457 = vector.extract_strided_slice %442 {offsets = [0, 192], sizes = [8, 64], strides = [1, 1]} : vector<8x256xf32> to vector<8x64xf32>
    %458 = arith.negf %457 : vector<8x64xf32>
    %459 = math.exp %458 : vector<8x64xf32>
    %cst_98 = arith.constant 1.000000e+00 : f32
    %460 = vector.broadcast %cst_98 : f32 to vector<8x64xf32>
    %461 = arith.addf %460, %459 : vector<8x64xf32>
    %462 = arith.divf %460, %461 : vector<8x64xf32>
    %463 = arith.mulf %454, %406 : vector<8x64xf32>
    %464 = arith.mulf %448, %456 : vector<8x64xf32>
    %465 = arith.addf %463, %464 : vector<8x64xf32>
    %466 = math.tanh %465 : vector<8x64xf32>
    %467 = arith.mulf %462, %466 : vector<8x64xf32>
    %468 = tpu.concatenate %467, %436 in 1 : vector<8x64xf32>, vector<8x64xf32> -> vector<8x128xf32>
    %cst_99 = arith.constant dense<0.000000e+00> : vector<8x256xf32>
    %469 = tpu.matmul %468, %4, %cst_99 {dimension_numbers = #tpu.dot_dimension_numbers<[1], [0], [0], [1], [0, 0, 1, 1], [], []>} : vector<8x128xf32>, vector<128x256xf32>, vector<8x256xf32> -> vector<8x256xf32>
    %470 = arith.addf %469, %7 : vector<8x256xf32>
    %471 = vector.extract_strided_slice %470 {offsets = [0, 0], sizes = [8, 64], strides = [1, 1]} : vector<8x256xf32> to vector<8x64xf32>
    %472 = arith.negf %471 : vector<8x64xf32>
    %473 = math.exp %472 : vector<8x64xf32>
    %cst_100 = arith.constant 1.000000e+00 : f32
    %474 = vector.broadcast %cst_100 : f32 to vector<8x64xf32>
    %475 = arith.addf %474, %473 : vector<8x64xf32>
    %476 = arith.divf %474, %475 : vector<8x64xf32>
    %477 = vector.extract_strided_slice %470 {offsets = [0, 64], sizes = [8, 64], strides = [1, 1]} : vector<8x256xf32> to vector<8x64xf32>
    %478 = arith.negf %477 : vector<8x64xf32>
    %479 = math.exp %478 : vector<8x64xf32>
    %cst_101 = arith.constant 1.000000e+00 : f32
    %480 = vector.broadcast %cst_101 : f32 to vector<8x64xf32>
    %481 = arith.addf %480, %479 : vector<8x64xf32>
    %482 = arith.divf %480, %481 : vector<8x64xf32>
    %483 = vector.extract_strided_slice %470 {offsets = [0, 128], sizes = [8, 64], strides = [1, 1]} : vector<8x256xf32> to vector<8x64xf32>
    %484 = math.tanh %483 : vector<8x64xf32>
    %485 = vector.extract_strided_slice %470 {offsets = [0, 192], sizes = [8, 64], strides = [1, 1]} : vector<8x256xf32> to vector<8x64xf32>
    %486 = arith.negf %485 : vector<8x64xf32>
    %487 = math.exp %486 : vector<8x64xf32>
    %cst_102 = arith.constant 1.000000e+00 : f32
    %488 = vector.broadcast %cst_102 : f32 to vector<8x64xf32>
    %489 = arith.addf %488, %487 : vector<8x64xf32>
    %490 = arith.divf %488, %489 : vector<8x64xf32>
    %491 = arith.mulf %482, %434 : vector<8x64xf32>
    %492 = arith.mulf %476, %484 : vector<8x64xf32>
    %493 = arith.addf %491, %492 : vector<8x64xf32>
    %494 = math.tanh %493 : vector<8x64xf32>
    %495 = arith.mulf %490, %494 : vector<8x64xf32>
    %c8_i32_103 = arith.constant 8 : i32
    %c0_104 = arith.constant 0 : index
    %c0_105 = arith.constant 0 : index
    %c0_106 = arith.constant 0 : index
    %496 = vector.load %arg11[%c0_104, %c0_105, %c0_106] : memref<4x8x64xf32, #tpu.memory_space<vmem>>, vector<1x8x64xf32>
    %497 = vector.shape_cast %496 : vector<1x8x64xf32> to vector<8x64xf32>
    %498 = vector.shape_cast %467 : vector<8x64xf32> to vector<1x8x64xf32>
    tpu.vector_store %arg11[%c0_104, %c0_105, %c0_106], %498 {strides = array<i32>} : memref<4x8x64xf32, #tpu.memory_space<vmem>>, vector<1x8x64xf32>,
    %c1_107 = arith.constant 1 : index
    %c0_108 = arith.constant 0 : index
    %c0_109 = arith.constant 0 : index
    %499 = vector.load %arg11[%c1_107, %c0_108, %c0_109] : memref<4x8x64xf32, #tpu.memory_space<vmem>>, vector<1x8x64xf32>
    %500 = vector.shape_cast %499 : vector<1x8x64xf32> to vector<8x64xf32>
    %501 = vector.shape_cast %465 : vector<8x64xf32> to vector<1x8x64xf32>
    tpu.vector_store %arg11[%c1_107, %c0_108, %c0_109], %501 {strides = array<i32>} : memref<4x8x64xf32, #tpu.memory_space<vmem>>, vector<1x8x64xf32>,
    %c2_110 = arith.constant 2 : index
    %c0_111 = arith.constant 0 : index
    %c0_112 = arith.constant 0 : index
    %502 = vector.load %arg11[%c2_110, %c0_111, %c0_112] : memref<4x8x64xf32, #tpu.memory_space<vmem>>, vector<1x8x64xf32>
    %503 = vector.shape_cast %502 : vector<1x8x64xf32> to vector<8x64xf32>
    %504 = vector.shape_cast %495 : vector<8x64xf32> to vector<1x8x64xf32>
    tpu.vector_store %arg11[%c2_110, %c0_111, %c0_112], %504 {strides = array<i32>} : memref<4x8x64xf32, #tpu.memory_space<vmem>>, vector<1x8x64xf32>,
    %c3_113 = arith.constant 3 : index
    %c0_114 = arith.constant 0 : index
    %c0_115 = arith.constant 0 : index
    %505 = vector.load %arg11[%c3_113, %c0_114, %c0_115] : memref<4x8x64xf32, #tpu.memory_space<vmem>>, vector<1x8x64xf32>
    %506 = vector.shape_cast %505 : vector<1x8x64xf32> to vector<8x64xf32>
    %507 = vector.shape_cast %493 : vector<8x64xf32> to vector<1x8x64xf32>
    tpu.vector_store %arg11[%c3_113, %c0_114, %c0_115], %507 {strides = array<i32>} : memref<4x8x64xf32, #tpu.memory_space<vmem>>, vector<1x8x64xf32>,
    %c0_i32_116 = arith.constant 0 : i32
    %508 = arith.cmpi eq, %arg0, %c0_i32_116 : i32
    %509 = arith.extui %508 : i1 to i32
    %c0_i32_117 = arith.constant 0 : i32
    %510 = arith.cmpi ne, %509, %c0_i32_117 : i32
    scf.if %510 {
      %c0_118 = arith.constant 0 : index
      %c0_119 = arith.constant 0 : index
      %511 = vector.load %arg7[%c0_118, %c0_119] : memref<64x128xf32, #tpu.memory_space<vmem>>, vector<64x128xf32>
      %cst_120 = arith.constant dense<0.000000e+00> : vector<8x128xf32>
      %512 = tpu.matmul %495, %511, %cst_120 {dimension_numbers = #tpu.dot_dimension_numbers<[1], [0], [0], [1], [0, 0, 1, 1], [], []>} : vector<8x64xf32>, vector<64x128xf32>, vector<8x128xf32> -> vector<8x128xf32>
      %c0_121 = arith.constant 0 : index
      %c0_122 = arith.constant 0 : index
      %513 = vector.load %arg8[%c0_121, %c0_122] : memref<1x128xf32, #tpu.memory_space<vmem>>, vector<1x128xf32>
      %514 = vector.broadcast %513 : vector<1x128xf32> to vector<8x128xf32>
      %515 = arith.addf %512, %514 : vector<8x128xf32>
      %c0_123 = arith.constant 0 : index
      %c0_124 = arith.constant 0 : index
      %516 = vector.load %arg9[%c0_123, %c0_124] : memref<8x128xf32, #tpu.memory_space<vmem>>, vector<8x128xf32>
      tpu.vector_store %arg9[%c0_123, %c0_124], %515 {strides = array<i32>} : memref<8x128xf32, #tpu.memory_space<vmem>>, vector<8x128xf32>,
    } else {
    }
    return
  }
  func.func @transform_0(%arg0: i32) -> (i32, i32) {
    %c0_i32 = arith.constant 0 : i32
    %c0_i32_0 = arith.constant 0 : i32
    return %arg0, %c0_i32 : i32, i32
  }
  func.func @transform_1(%arg0: i32) -> (i32, i32) {
    %c0_i32 = arith.constant 0 : i32
    %c0_i32_0 = arith.constant 0 : i32
    %c0_i32_1 = arith.constant 0 : i32
    return %c0_i32, %c0_i32_0 : i32, i32
  }
  func.func @transform_2(%arg0: i32) -> (i32, i32) {
    %c0_i32 = arith.constant 0 : i32
    %c0_i32_0 = arith.constant 0 : i32
    %c0_i32_1 = arith.constant 0 : i32
    return %c0_i32, %c0_i32_0 : i32, i32
  }
  func.func @transform_3(%arg0: i32) -> (i32, i32) {
    %c0_i32 = arith.constant 0 : i32
    %c0_i32_0 = arith.constant 0 : i32
    %c0_i32_1 = arith.constant 0 : i32
    return %c0_i32, %c0_i32_0 : i32, i32
  }
  func.func @transform_4(%arg0: i32) -> (i32, i32) {
    %c0_i32 = arith.constant 0 : i32
    %c0_i32_0 = arith.constant 0 : i32
    %c0_i32_1 = arith.constant 0 : i32
    return %c0_i32, %c0_i32_0 : i32, i32
  }
  func.func @transform_5(%arg0: i32) -> (i32, i32) {
    %c0_i32 = arith.constant 0 : i32
    %c0_i32_0 = arith.constant 0 : i32
    %c0_i32_1 = arith.constant 0 : i32
    return %c0_i32, %c0_i32_0 : i32, i32
  }
  func.func @transform_6(%arg0: i32) -> (i32, i32) {
    %c0_i32 = arith.constant 0 : i32
    %c0_i32_0 = arith.constant 0 : i32
    %c0_i32_1 = arith.constant 0 : i32
    return %c0_i32, %c0_i32_0 : i32, i32
  }
  func.func @transform_7(%arg0: i32) -> (i32, i32) {
    %c0_i32 = arith.constant 0 : i32
    %c0_i32_0 = arith.constant 0 : i32
    %c0_i32_1 = arith.constant 0 : i32
    return %c0_i32, %c0_i32_0 : i32, i32
  }
  func.func @transform_8(%arg0: i32) -> (i32, i32) {
    %c0_i32 = arith.constant 0 : i32
    %c0_i32_0 = arith.constant 0 : i32
    %c0_i32_1 = arith.constant 0 : i32
    return %c0_i32, %c0_i32_0 : i32, i32
  }
}

</mosaic_0001>

<llo_original>
// kernel: tpu_custom_call.1
$region0: #{tpu_custom_call.1}
  #allocation0 [shape = 'u32[]', space=smem, size = 0x4, offset = 0x4, fixed_abs, tag = 'smem constant byte address 0x4 - core index']
  #allocation1 [shape = 'u32[144,128]{1,0:T(1,128)}', space=vmem, size = 0x12000, scoped, tag = 'internal scratch']
  #allocation2 [shape = 'f32[64,256]{1,0:T(8,128)}', space=vmem, size = 0x10000, scoped, tag = 'scratch operand']
  #allocation3 [shape = 'f32[4,8,64]{2,1,0:T(8,128)}', space=vmem, size = 0x4000, scoped, tag = 'scratch operand']
  %s0 = inlined_call_operand.hbm [shape: f32[64,128], index: 0, kind: input, shape index: {}]
  %s1 = inlined_call_operand.hbm [shape: f32[128,256], index: 1, kind: input, shape index: {}]
  %s2 = inlined_call_operand.vmem [shape: f32[1,256], index: 2, kind: input, shape index: {}]
  %s3 = inlined_call_operand.hbm [shape: f32[64,256], index: 3, kind: input, shape index: {}]
  %s4 = inlined_call_operand.hbm [shape: f32[128,256], index: 4, kind: input, shape index: {}]
  %s5 = inlined_call_operand.vmem [shape: f32[1,256], index: 5, kind: input, shape index: {}]
  %s6 = inlined_call_operand.hbm [shape: f32[64,128], index: 6, kind: input, shape index: {}]
  %s7 = inlined_call_operand.vmem [shape: f32[1,128], index: 7, kind: input, shape index: {}]
  %s8 = inlined_call_operand.hbm [shape: f32[8,128], index: 8, kind: output, shape index: {}]
  %s9 = sld [smem:[#allocation0]]
  $region70: #{tpu_custom_call.1} parent=0
    _
  %s11 = ssub.s32 1, %s9
  %s12 = scalar_select 0, %s11, %s9
  $region1: #{tpu_custom_call.1} parent=0
    #allocation4 [shape = 'u8[32768]{0}', space=vmem, size = 0x8000, scoped, tag = 'input window, operand 0, single buffered']
    #allocation5 [shape = 's32[1]{0}', space=sflag, size = 0x4, scoped, tag = 'scoped memory for tpu_custom_call.1']
    #allocation6 [shape = 's32[1]{0}', space=sflag, size = 0x4, scoped, tag = 'scoped memory for tpu_custom_call.1']
    #allocation7 [shape = 'u8[131072]{0}', space=vmem, size = 0x20000, scoped, tag = 'input window, operand 1, single buffered']
    #allocation8 [shape = 's32[1]{0}', space=sflag, size = 0x4, scoped, tag = 'scoped memory for tpu_custom_call.1']
    #allocation9 [shape = 'u8[65536]{0}', space=vmem, size = 0x10000, scoped, tag = 'input window, operand 3, single buffered']
    #allocation10 [shape = 'u8[131072]{0}', space=vmem, size = 0x20000, scoped, tag = 'input window, operand 4, single buffered']
    #allocation11 [shape = 's32[1]{0}', space=sflag, size = 0x4, scoped, tag = 'scoped memory for tpu_custom_call.1']
    #allocation12 [shape = 'u8[32768]{0}', space=vmem, size = 0x8000, scoped, tag = 'input window, operand 6, single buffered']
    #allocation13 [shape = 'u8[4096]{0}', space=vmem, size = 0x1000, scoped, tag = 'output window, operand 0, single buffered']
    %13 = vsyncpa [#allocation5], 0
    %14 = vsyncpa [#allocation8], 0
    %15 = vsyncpa [#allocation11], 0
    %16 = vsyncpa [#allocation6], 0
    // Predicated region
    $region2: #{tpu_custom_call.1} parent=1 // pred_check
      _
    $region3: #{tpu_custom_call.1} parent=1 // pred_check_branch
      %18 = sbr.rel (0) target = $region5
    $region4: #{tpu_custom_call.1} parent=1 // pred_region
      %s20 = ssub.s32 1024, 1024
      %21 = vsyncadd [#allocation5], %s20
      %s22 = sshll.u32 [#allocation4], 4
      %s23 = int_to_ptr.vmem [resolvable:$true] %s22
      %28 = dma.hbm_to_vmem [thread:$0]  %s0, 1024, %s23, [#allocation5], 128, 128, 8
    $region5: #{tpu_custom_call.1} parent=1 // pred_fallthru
      _
    // Predicated region
    $region6: #{tpu_custom_call.1} parent=1 // pred_check
      _
    $region7: #{tpu_custom_call.1} parent=1 // pred_check_branch
      %30 = sbr.rel (0) target = $region9
    $region8: #{tpu_custom_call.1} parent=1 // pred_region
      %s32 = ssub.s32 4096, 4096
      %33 = vsyncadd [#allocation8], %s32
      %s34 = sshll.u32 [#allocation7], 4
      %s35 = int_to_ptr.vmem [resolvable:$true] %s34
      %40 = dma.hbm_to_vmem [thread:$0]  %s1, 4096, %s35, [#allocation8], 256, 256, 16
    $region9: #{tpu_custom_call.1} parent=1 // pred_fallthru
      _
    // Predicated region
    $region10: #{tpu_custom_call.1} parent=1 // pred_check
      _
    $region11: #{tpu_custom_call.1} parent=1 // pred_check_branch
      %42 = sbr.rel (0) target = $region13
    $region12: #{tpu_custom_call.1} parent=1 // pred_region
      _
    $region13: #{tpu_custom_call.1} parent=1 // pred_fallthru
      _
    // Predicated region
    $region14: #{tpu_custom_call.1} parent=1 // pred_check
      _
    $region15: #{tpu_custom_call.1} parent=1 // pred_check_branch
      %44 = sbr.rel (0) target = $region17
    $region16: #{tpu_custom_call.1} parent=1 // pred_region
      %s46 = ssub.s32 2048, 2048
      %47 = vsyncadd [#allocation8], %s46
      %s48 = sshll.u32 [#allocation9], 4
      %s49 = int_to_ptr.vmem [resolvable:$true] %s48
      %54 = dma.hbm_to_vmem [thread:$0]  %s3, 2048, %s49, [#allocation8], 256, 256, 16
    $region17: #{tpu_custom_call.1} parent=1 // pred_fallthru
      _
    // Predicated region
    $region18: #{tpu_custom_call.1} parent=1 // pred_check
      _
    $region19: #{tpu_custom_call.1} parent=1 // pred_check_branch
      %56 = sbr.rel (0) target = $region21
    $region20: #{tpu_custom_call.1} parent=1 // pred_region
      %s58 = ssub.s32 4096, 4096
      %59 = vsyncadd [#allocation11], %s58
      %s60 = sshll.u32 [#allocation10], 4
      %s61 = int_to_ptr.vmem [resolvable:$true] %s60
      %66 = dma.hbm_to_vmem [thread:$0]  %s4, 4096, %s61, [#allocation11], 256, 256, 16
    $region21: #{tpu_custom_call.1} parent=1 // pred_fallthru
      _
    // Predicated region
    $region22: #{tpu_custom_call.1} parent=1 // pred_check
      _
    $region23: #{tpu_custom_call.1} parent=1 // pred_check_branch
      %68 = sbr.rel (0) target = $region25
    $region24: #{tpu_custom_call.1} parent=1 // pred_region
      _
    $region25: #{tpu_custom_call.1} parent=1 // pred_fallthru
      _
    // Predicated region
    $region26: #{tpu_custom_call.1} parent=1 // pred_check
      _
    $region27: #{tpu_custom_call.1} parent=1 // pred_check_branch
      %70 = sbr.rel (0) target = $region29
    $region28: #{tpu_custom_call.1} parent=1 // pred_region
      %s72 = ssub.s32 1024, 1024
      %73 = vsyncadd [#allocation11], %s72
      %s74 = sshll.u32 [#allocation12], 4
      %s75 = int_to_ptr.vmem [resolvable:$true] %s74
      %80 = dma.hbm_to_vmem [thread:$0]  %s6, 1024, %s75, [#allocation11], 128, 128, 8
    $region29: #{tpu_custom_call.1} parent=1 // pred_fallthru
      _
    // Predicated region
    $region30: #{tpu_custom_call.1} parent=1 // pred_check
      _
    $region31: #{tpu_custom_call.1} parent=1 // pred_check_branch
      %82 = sbr.rel (0) target = $region33
    $region32: #{tpu_custom_call.1} parent=1 // pred_region
      _
    $region33: #{tpu_custom_call.1} parent=1 // pred_fallthru
      _
    // Predicated region
    $region34: #{tpu_custom_call.1} parent=1 // pred_check
      _
    $region35: #{tpu_custom_call.1} parent=1 // pred_check_branch
      %84 = sbr.rel (0) target = $region37
    $region36: #{tpu_custom_call.1} parent=1 // pred_region
      %85 = dma.done [#allocation5], 1024
    $region37: #{tpu_custom_call.1} parent=1 // pred_fallthru
      _
    // Predicated region
    $region38: #{tpu_custom_call.1} parent=1 // pred_check
      _
    $region39: #{tpu_custom_call.1} parent=1 // pred_check_branch
      %87 = sbr.rel (0) target = $region41
    $region40: #{tpu_custom_call.1} parent=1 // pred_region
      %88 = dma.done [#allocation8], 4096
    $region41: #{tpu_custom_call.1} parent=1 // pred_fallthru
      _
    // Predicated region
    $region42: #{tpu_custom_call.1} parent=1 // pred_check
      _
    $region43: #{tpu_custom_call.1} parent=1 // pred_check_branch
      %90 = sbr.rel (0) target = $region45
    $region44: #{tpu_custom_call.1} parent=1 // pred_region
      %91 = dma.done [#allocation8], 2048
    $region45: #{tpu_custom_call.1} parent=1 // pred_fallthru
      _
    // Predicated region
    $region46: #{tpu_custom_call.1} parent=1 // pred_check
      _
    $region47: #{tpu_custom_call.1} parent=1 // pred_check_branch
      %93 = sbr.rel (0) target = $region49
    $region48: #{tpu_custom_call.1} parent=1 // pred_region
      %94 = dma.done [#allocation11], 4096
    $region49: #{tpu_custom_call.1} parent=1 // pred_fallthru
      _
    // Predicated region
    $region50: #{tpu_custom_call.1} parent=1 // pred_check
      _
    $region51: #{tpu_custom_call.1} parent=1 // pred_check_branch
      %96 = sbr.rel (0) target = $region53
    $region52: #{tpu_custom_call.1} parent=1 // pred_region
      %97 = dma.done [#allocation11], 1024
    $region53: #{tpu_custom_call.1} parent=1 // pred_fallthru
      _
    %p98 = scmp.eq.s32.totalorder 0, 0
    // Predicated region
    $region54: #{tpu_custom_call.1} parent=1 // pred_check
      %p99 = pneg %p98
    $region55: #{tpu_custom_call.1} parent=1 // pred_check_branch
      %101 = sbr.rel (%p99) target = $region57
    $region56: #{tpu_custom_call.1} parent=1 // pred_region
      %vm102 = vcmask 523264
      %103 = vst.msk [vmem:[#allocation3] sm:$0xff] %vm102, 0.0
      %104 = vst.msk [vmem:[#allocation3 + $0x8] sm:$0xff] %vm102, 0.0
      %105 = vst.msk [vmem:[#allocation3 + $0x10] sm:$0xff] %vm102, 0.0
      %106 = vst.msk [vmem:[#allocation3 + $0x18] sm:$0xff] %vm102, 0.0
    $region57: #{tpu_custom_call.1} parent=1 // pred_fallthru
      _
    %v107 = vld [vmem:[#allocation9] sm:$0xff]
    %v108 = vld [vmem:[#allocation9 + $0x8] sm:$0xff]
    %v109 = vld [vmem:[#allocation9 + $0x10] sm:$0xff]
    %v110 = vld [vmem:[#allocation9 + $0x18] sm:$0xff]
    %v111 = vld [vmem:[#allocation9 + $0x20] sm:$0xff]
    %v112 = vld [vmem:[#allocation9 + $0x28] sm:$0xff]
    %v113 = vld [vmem:[#allocation9 + $0x30] sm:$0xff]
    %v114 = vld [vmem:[#allocation9 + $0x38] sm:$0xff]
    %v115 = vld [vmem:[#allocation9 + $0x40] sm:$0xff]
    %v116 = vld [vmem:[#allocation9 + $0x48] sm:$0xff]
    %v117 = vld [vmem:[#allocation9 + $0x50] sm:$0xff]
    %v118 = vld [vmem:[#allocation9 + $0x58] sm:$0xff]
    %v119 = vld [vmem:[#allocation9 + $0x60] sm:$0xff]
    %v120 = vld [vmem:[#allocation9 + $0x68] sm:$0xff]
    %v121 = vld [vmem:[#allocation9 + $0x70] sm:$0xff]
    %v122 = vld [vmem:[#allocation9 + $0x78] sm:$0xff]
    %v123 = vld [vmem:[#allocation10] sm:$0xff]
    %v124 = vld [vmem:[#allocation10 + $0x8] sm:$0xff]
    %v125 = vld [vmem:[#allocation10 + $0x10] sm:$0xff]
    %v126 = vld [vmem:[#allocation10 + $0x18] sm:$0xff]
    %v127 = vld [vmem:[#allocation10 + $0x20] sm:$0xff]
    %v128 = vld [vmem:[#allocation10 + $0x28] sm:$0xff]
    %v129 = vld [vmem:[#allocation10 + $0x30] sm:$0xff]
    %v130 = vld [vmem:[#allocation10 + $0x38] sm:$0xff]
    %v131 = vld [vmem:[#allocation10 + $0x40] sm:$0xff]
    %v132 = vld [vmem:[#allocation10 + $0x48] sm:$0xff]
    %v133 = vld [vmem:[#allocation10 + $0x50] sm:$0xff]
    %v134 = vld [vmem:[#allocation10 + $0x58] sm:$0xff]
    %v135 = vld [vmem:[#allocation10 + $0x60] sm:$0xff]
    %v136 = vld [vmem:[#allocation10 + $0x68] sm:$0xff]
    %v137 = vld [vmem:[#allocation10 + $0x70] sm:$0xff]
    %v138 = vld [vmem:[#allocation10 + $0x78] sm:$0xff]
    %v139 = vld [vmem:[#allocation10 + $0x80] sm:$0xff]
    %v140 = vld [vmem:[#allocation10 + $0x88] sm:$0xff]
    %v141 = vld [vmem:[#allocation10 + $0x90] sm:$0xff]
    %v142 = vld [vmem:[#allocation10 + $0x98] sm:$0xff]
    %v143 = vld [vmem:[#allocation10 + $0xa0] sm:$0xff]
    %v144 = vld [vmem:[#allocation10 + $0xa8] sm:$0xff]
    %v145 = vld [vmem:[#allocation10 + $0xb0] sm:$0xff]
    %v146 = vld [vmem:[#allocation10 + $0xb8] sm:$0xff]
    %v147 = vld [vmem:[#allocation10 + $0xc0] sm:$0xff]
    %v148 = vld [vmem:[#allocation10 + $0xc8] sm:$0xff]
    %v149 = vld [vmem:[#allocation10 + $0xd0] sm:$0xff]
    %v150 = vld [vmem:[#allocation10 + $0xd8] sm:$0xff]
    %v151 = vld [vmem:[#allocation10 + $0xe0] sm:$0xff]
    %v152 = vld [vmem:[#allocation10 + $0xe8] sm:$0xff]
    %v153 = vld [vmem:[#allocation10 + $0xf0] sm:$0xff]
    %v154 = vld [vmem:[#allocation10 + $0xf8] sm:$0xff]
    %v155 = vld [vmem:[%s5] sm:$0x3]
    %v157 = vlaneseq
    %v158 = vshrl.u32 %v157, 7
    %v159 = vsub.s32 0, %v158
    %v160 = vrot.slane %v155, %v159
    %v161 = vlaneseq
    %v162 = vshrl.u32 %v161, 7
    %v163 = vsub.s32 1, %v162
    %v164 = vrot.slane %v155, %v163
    %v167 = vld [vmem:[#allocation7] sm:$0xff]
    %v168 = vld [vmem:[#allocation7 + $0x8] sm:$0xff]
    %v169 = vld [vmem:[#allocation7 + $0x10] sm:$0xff]
    %v170 = vld [vmem:[#allocation7 + $0x18] sm:$0xff]
    %v171 = vld [vmem:[#allocation7 + $0x20] sm:$0xff]
    %v172 = vld [vmem:[#allocation7 + $0x28] sm:$0xff]
    %v173 = vld [vmem:[#allocation7 + $0x30] sm:$0xff]
    %v174 = vld [vmem:[#allocation7 + $0x38] sm:$0xff]
    %v175 = vld [vmem:[#allocation7 + $0x40] sm:$0xff]
    %v176 = vld [vmem:[#allocation7 + $0x48] sm:$0xff]
    %v177 = vld [vmem:[#allocation7 + $0x50] sm:$0xff]
    %v178 = vld [vmem:[#allocation7 + $0x58] sm:$0xff]
    %v179 = vld [vmem:[#allocation7 + $0x60] sm:$0xff]
    %v180 = vld [vmem:[#allocation7 + $0x68] sm:$0xff]
    %v181 = vld [vmem:[#allocation7 + $0x70] sm:$0xff]
    %v182 = vld [vmem:[#allocation7 + $0x78] sm:$0xff]
    %v183 = vld [vmem:[#allocation7 + $0x80] sm:$0xff]
    %v184 = vld [vmem:[#allocation7 + $0x88] sm:$0xff]
    %v185 = vld [vmem:[#allocation7 + $0x90] sm:$0xff]
    %v186 = vld [vmem:[#allocation7 + $0x98] sm:$0xff]
    %v187 = vld [vmem:[#allocation7 + $0xa0] sm:$0xff]
    %v188 = vld [vmem:[#allocation7 + $0xa8] sm:$0xff]
    %v189 = vld [vmem:[#allocation7 + $0xb0] sm:$0xff]
    %v190 = vld [vmem:[#allocation7 + $0xb8] sm:$0xff]
    %v191 = vld [vmem:[#allocation7 + $0xc0] sm:$0xff]
    %v192 = vld [vmem:[#allocation7 + $0xc8] sm:$0xff]
    %v193 = vld [vmem:[#allocation7 + $0xd0] sm:$0xff]
    %v194 = vld [vmem:[#allocation7 + $0xd8] sm:$0xff]
    %v195 = vld [vmem:[#allocation7 + $0xe0] sm:$0xff]
    %v196 = vld [vmem:[#allocation7 + $0xe8] sm:$0xff]
    %v197 = vld [vmem:[#allocation7 + $0xf0] sm:$0xff]
    %v198 = vld [vmem:[#allocation7 + $0xf8] sm:$0xff]
    %v199 = vld [vmem:[#allocation4] sm:$0xff]
    %v200 = vld [vmem:[#allocation4 + $0x8] sm:$0xff]
    %v201 = vld [vmem:[#allocation4 + $0x10] sm:$0xff]
    %v202 = vld [vmem:[#allocation4 + $0x18] sm:$0xff]
    %v203 = vld [vmem:[#allocation4 + $0x20] sm:$0xff]
    %v204 = vld [vmem:[#allocation4 + $0x28] sm:$0xff]
    %v205 = vld [vmem:[#allocation4 + $0x30] sm:$0xff]
    %v206 = vld [vmem:[#allocation4 + $0x38] sm:$0xff]
    %v207 = vld [vmem:[%s2] sm:$0x3]
    %v209 = vlaneseq
    %v210 = vshrl.u32 %v209, 7
    %v211 = vsub.s32 0, %v210
    %v212 = vrot.slane %v207, %v211
    %v213 = vlaneseq
    %v214 = vshrl.u32 %v213, 7
    %v215 = vsub.s32 1, %v214
    %v216 = vrot.slane %v207, %v215
    %219 = vmatprep.subr.mxu0 %v198
    %220 = vmatpush1.msra.mxu0 %v197
    %221 = vmatprep.subr.mxu0 %v196
    %222 = vmatpush1.msra.mxu0 %v195
    %223 = vmatprep.subr.mxu0 %v194
    %224 = vmatpush1.msra.mxu0 %v193
    %225 = vmatprep.subr.mxu0 %v192
    %226 = vmatpush1.msra.mxu0 %v191
    %227 = vmatprep.subr.mxu0 %v190
    %228 = vmatpush1.msra.mxu0 %v189
    %229 = vmatprep.subr.mxu0 %v188
    %230 = vmatpush1.msra.mxu0 %v187
    %231 = vmatprep.subr.mxu0 %v186
    %232 = vmatpush1.msra.mxu0 %v185
    %233 = vmatprep.subr.mxu0 %v184
    %234 = vmatpush1.msra.mxu0 %v183
    %235 = vmatprep.subr.mxu0 %v182
    %236 = vmatpush1.msra.mxu0 %v181
    %237 = vmatprep.subr.mxu0 %v180
    %238 = vmatpush1.msra.mxu0 %v179
    %239 = vmatprep.subr.mxu0 %v178
    %240 = vmatpush1.msra.mxu0 %v177
    %241 = vmatprep.subr.mxu0 %v176
    %242 = vmatpush1.msra.mxu0 %v175
    %243 = vmatprep.subr.mxu0 %v174
    %244 = vmatpush1.msra.mxu0 %v173
    %245 = vmatprep.subr.mxu0 %v172
    %246 = vmatpush1.msra.mxu0 %v171
    %247 = vmatprep.subr.mxu0 %v170
    %248 = vmatpush1.msra.mxu0 %v169
    %249 = vmatprep.subr.mxu0 %v168
    %250 = vmatpush1.msra.mxu0 %v167
    %251 = vmatprep.subr.mxu0 0.0
    %252 = vmatpush2.msra.mxu0 0.0
    %253 = vmatprep.subr.mxu0 0.0
    %254 = vmatpush2.msra.mxu0 0.0
    %255 = vmatprep.subr.mxu0 0.0
    %256 = vmatpush2.msra.mxu0 0.0
    %257 = vmatprep.subr.mxu0 0.0
    %258 = vmatpush2.msra.mxu0 0.0
    %259 = vmatprep.subr.mxu0 0.0
    %260 = vmatpush2.msra.mxu0 0.0
    %261 = vmatprep.subr.mxu0 0.0
    %262 = vmatpush2.msra.mxu0 0.0
    %263 = vmatprep.subr.mxu0 0.0
    %264 = vmatpush2.msra.mxu0 0.0
    %265 = vmatprep.subr.mxu0 0.0
    %266 = vmatpush2.msra.mxu0 0.0
    %267 = vmatprep.subr.mxu0 0.0
    %268 = vmatpush2.msra.mxu0 0.0
    %269 = vmatprep.subr.mxu0 0.0
    %270 = vmatpush2.msra.mxu0 0.0
    %271 = vmatprep.subr.mxu0 0.0
    %272 = vmatpush2.msra.mxu0 0.0
    %273 = vmatprep.subr.mxu0 0.0
    %274 = vmatpush2.msra.mxu0 0.0
    %275 = vmatprep.subr.mxu0 0.0
    %276 = vmatpush2.msra.mxu0 0.0
    %277 = vmatprep.subr.mxu0 0.0
    %278 = vmatpush2.msra.mxu0 0.0
    %279 = vmatprep.subr.mxu0 0.0
    %280 = vmatpush2.msra.mxu0 0.0
    %281 = vmatprep.subr.mxu0 0.0
    %282 = vmatpush2.msra.mxu0 0.0
    %283 = vmatprep.mubr.f32.mxu0 0.0
    %284 = vmatmul.mubr.f32.gmra.mxu0 %v199
    %v285 = vpop.f32.mrf.mxu0
    %v286 = vadd.f32 %v212, %v285
    %v287 = vpop.f32.mrf.mxu0
    %v288 = vadd.f32 %v216, %v287
    %289 = vmatprep.mubr.f32.mxu0 0.0
    %290 = vmatmul.mubr.f32.gmra.mxu0 %v200
    %v291 = vpop.f32.mrf.mxu0
    %v292 = vadd.f32 %v212, %v291
    %v293 = vpop.f32.mrf.mxu0
    %v294 = vadd.f32 %v216, %v293
    %295 = vmatprep.mubr.f32.mxu0 0.0
    %296 = vmatmul.mubr.f32.gmra.mxu0 %v201
    %v297 = vpop.f32.mrf.mxu0
    %v298 = vadd.f32 %v212, %v297
    %v299 = vpop.f32.mrf.mxu0
    %v300 = vadd.f32 %v216, %v299
    %301 = vmatprep.mubr.f32.mxu0 0.0
    %302 = vmatmul.mubr.f32.gmra.mxu0 %v202
    %v303 = vpop.f32.mrf.mxu0
    %v304 = vadd.f32 %v212, %v303
    %v305 = vpop.f32.mrf.mxu0
    %v306 = vadd.f32 %v216, %v305
    %307 = vmatprep.mubr.f32.mxu0 0.0
    %308 = vmatmul.mubr.f32.gmra.mxu0 %v203
    %v309 = vpop.f32.mrf.mxu0
    %v310 = vadd.f32 %v212, %v309
    %v311 = vpop.f32.mrf.mxu0
    %v312 = vadd.f32 %v216, %v311
    %313 = vmatprep.mubr.f32.mxu0 0.0
    %314 = vmatmul.mubr.f32.gmra.mxu0 %v204
    %v315 = vpop.f32.mrf.mxu0
    %v316 = vadd.f32 %v212, %v315
    %v317 = vpop.f32.mrf.mxu0
    %v318 = vadd.f32 %v216, %v317
    %319 = vmatprep.mubr.f32.mxu0 0.0
    %320 = vmatmul.mubr.f32.gmra.mxu0 %v205
    %v321 = vpop.f32.mrf.mxu0
    %v322 = vadd.f32 %v212, %v321
    %v323 = vpop.f32.mrf.mxu0
    %v324 = vadd.f32 %v216, %v323
    %325 = vmatprep.mubr.f32.mxu0 0.0
    %326 = vmatmul.mubr.f32.gmra.mxu0 %v206
    %v327 = vpop.f32.mrf.mxu0
    %v328 = vadd.f32 %v212, %v327
    %v329 = vpop.f32.mrf.mxu0
    %v330 = vadd.f32 %v216, %v329
    %331 = vdwg.mxu0
    %332 = vst [vmem:[#allocation2] sm:$0xff] %v286
    %333 = vst [vmem:[#allocation2 + $0x8] sm:$0xff] %v288
    %334 = vst [vmem:[#allocation2 + $0x10] sm:$0xff] %v292
    %335 = vst [vmem:[#allocation2 + $0x18] sm:$0xff] %v294
    %336 = vst [vmem:[#allocation2 + $0x20] sm:$0xff] %v298
    %337 = vst [vmem:[#allocation2 + $0x28] sm:$0xff] %v300
    %338 = vst [vmem:[#allocation2 + $0x30] sm:$0xff] %v304
    %339 = vst [vmem:[#allocation2 + $0x38] sm:$0xff] %v306
    %340 = vst [vmem:[#allocation2 + $0x40] sm:$0xff] %v310
    %341 = vst [vmem:[#allocation2 + $0x48] sm:$0xff] %v312
    %342 = vst [vmem:[#allocation2 + $0x50] sm:$0xff] %v316
    %343 = vst [vmem:[#allocation2 + $0x58] sm:$0xff] %v318
    %344 = vst [vmem:[#allocation2 + $0x60] sm:$0xff] %v322
    %345 = vst [vmem:[#allocation2 + $0x68] sm:$0xff] %v324
    %346 = vst [vmem:[#allocation2 + $0x70] sm:$0xff] %v328
    %347 = vst [vmem:[#allocation2 + $0x78] sm:$0xff] %v330
    %v348 = vld [vmem:[#allocation3] sm:$0xff]
    %s349 = scalar_lea.vmem [#allocation3], 8
    %v350 = vld [vmem:[%s349] sm:$0xff]
    %s351 = scalar_lea.vmem [#allocation3], 16
    %v352 = vld [vmem:[%s351] sm:$0xff]
    %s353 = scalar_lea.vmem [#allocation3], 24
    %v354 = vld [vmem:[%s353] sm:$0xff]
    %s355 = smul.u32 0, 2
    %s356 = smul.addr %s355, 8
    %s357 = scalar_lea.vmem [#allocation2], %s356
    %v358 = vld [vmem:[%s357] sm:$0xff]
    %v359 = vld [vmem:[%s357 + $0x8] sm:$0xff]
    %vm360 = vcmask 523264
    %v362 = vsel %vm360, %v348, 0
    %364 = vmatprep.subr.mxu0 0.0
    %365 = vmatpush1.msra.mxu0 0.0
    %366 = vmatprep.subr.mxu0 0.0
    %367 = vmatpush1.msra.mxu0 0.0
    %368 = vmatprep.subr.mxu0 0.0
    %369 = vmatpush1.msra.mxu0 0.0
    %370 = vmatprep.subr.mxu0 0.0
    %371 = vmatpush1.msra.mxu0 0.0
    %372 = vmatprep.subr.mxu0 0.0
    %373 = vmatpush1.msra.mxu0 0.0
    %374 = vmatprep.subr.mxu0 0.0
    %375 = vmatpush1.msra.mxu0 0.0
    %376 = vmatprep.subr.mxu0 0.0
    %377 = vmatpush1.msra.mxu0 0.0
    %378 = vmatprep.subr.mxu0 0.0
    %379 = vmatpush1.msra.mxu0 0.0
    %380 = vmatprep.subr.mxu0 %v122
    %381 = vmatpush1.msra.mxu0 %v121
    %382 = vmatprep.subr.mxu0 %v120
    %383 = vmatpush1.msra.mxu0 %v119
    %384 = vmatprep.subr.mxu0 %v118
    %385 = vmatpush1.msra.mxu0 %v117
    %386 = vmatprep.subr.mxu0 %v116
    %387 = vmatpush1.msra.mxu0 %v115
    %388 = vmatprep.subr.mxu0 %v114
    %389 = vmatpush1.msra.mxu0 %v113
    %390 = vmatprep.subr.mxu0 %v112
    %391 = vmatpush1.msra.mxu0 %v111
    %392 = vmatprep.subr.mxu0 %v110
    %393 = vmatpush1.msra.mxu0 %v109
    %394 = vmatprep.subr.mxu0 %v108
    %395 = vmatpush1.msra.mxu0 %v107
    %396 = vmatprep.subr.mxu0 0.0
    %397 = vmatpush2.msra.mxu0 0.0
    %398 = vmatprep.subr.mxu0 0.0
    %399 = vmatpush2.msra.mxu0 0.0
    %400 = vmatprep.subr.mxu0 0.0
    %401 = vmatpush2.msra.mxu0 0.0
    %402 = vmatprep.subr.mxu0 0.0
    %403 = vmatpush2.msra.mxu0 0.0
    %404 = vmatprep.subr.mxu0 0.0
    %405 = vmatpush2.msra.mxu0 0.0
    %406 = vmatprep.subr.mxu0 0.0
    %407 = vmatpush2.msra.mxu0 0.0
    %408 = vmatprep.subr.mxu0 0.0
    %409 = vmatpush2.msra.mxu0 0.0
    %410 = vmatprep.subr.mxu0 0.0
    %411 = vmatpush2.msra.mxu0 0.0
    %412 = vmatprep.subr.mxu0 0.0
    %413 = vmatpush2.msra.mxu0 0.0
    %414 = vmatprep.subr.mxu0 0.0
    %415 = vmatpush2.msra.mxu0 0.0
    %416 = vmatprep.subr.mxu0 0.0
    %417 = vmatpush2.msra.mxu0 0.0
    %418 = vmatprep.subr.mxu0 0.0
    %419 = vmatpush2.msra.mxu0 0.0
    %420 = vmatprep.subr.mxu0 0.0
    %421 = vmatpush2.msra.mxu0 0.0
    %422 = vmatprep.subr.mxu0 0.0
    %423 = vmatpush2.msra.mxu0 0.0
    %424 = vmatprep.subr.mxu0 0.0
    %425 = vmatpush2.msra.mxu0 0.0
    %426 = vmatprep.subr.mxu0 0.0
    %427 = vmatpush2.msra.mxu0 0.0
    %428 = vmatprep.mubr.f32.mxu0 0.0
    %429 = vmatmul.mubr.f32.gmra.mxu0 %v362
    %v430 = vpop.f32.mrf.mxu0
    %v431 = vadd.f32 0.0, %v430
    %v432 = vpop.f32.mrf.mxu0
    %v433 = vadd.f32 0.0, %v432
    %434 = vdwg.mxu0
    %v435 = vadd.f32 %v358, %v431
    %v436 = vadd.f32 %v359, %v433
    %v437 = vxor.u32 %v435, 2147483648
    %v438 = vmul.f32 %v437, 1.442695
    %v439 = vpow.pop %v438
    %v440 = vadd.f32 %v439, 1.0
    %v441 = vrcp.pop %v440
    %v442 = vmul.f32 1.0, %v441
    %v443 = vtanh.pop %v436
    %v444 = vxor.u32 %v436, 2147483648
    %v445 = vmul.f32 %v444, 1.442695
    %v446 = vpow.pop %v445
    %v447 = vadd.f32 %v446, 1.0
    %v448 = vrcp.pop %v447
    %v449 = vmul.f32 1.0, %v448
    %451 = vrot.lane.b32.xlu0 %v350, 64
    %v452 = vpop.permute.xlu0 %451
    %v454 = vmul.f32 %v442, %v452
    %v455 = vmul.f32 %v442, %v443
    %457 = vrot.lane.b32.xlu0 %v455, 64
    %v458 = vpop.permute.xlu0 %457
    %v460 = vadd.f32 %v454, %v458
    %v461 = vtanh.pop %v460
    %v462 = vmul.f32 %v449, %v461
    %464 = vrot.lane.b32.xlu0 %v462, 64
    %v465 = vpop.permute.xlu0 %464
    %468 = vrot.lane.b32.xlu0 %v352, 64
    %v469 = vpop.permute.xlu0 %468
    %v471 = vsel %vm360, %v465, %v469
    %472 = vmatprep.subr.mxu0 %v154
    %473 = vmatpush1.msra.mxu0 %v153
    %474 = vmatprep.subr.mxu0 %v152
    %475 = vmatpush1.msra.mxu0 %v151
    %476 = vmatprep.subr.mxu0 %v150
    %477 = vmatpush1.msra.mxu0 %v149
    %478 = vmatprep.subr.mxu0 %v148
    %479 = vmatpush1.msra.mxu0 %v147
    %480 = vmatprep.subr.mxu0 %v146
    %481 = vmatpush1.msra.mxu0 %v145
    %482 = vmatprep.subr.mxu0 %v144
    %483 = vmatpush1.msra.mxu0 %v143
    %484 = vmatprep.subr.mxu0 %v142
    %485 = vmatpush1.msra.mxu0 %v141
    %486 = vmatprep.subr.mxu0 %v140
    %487 = vmatpush1.msra.mxu0 %v139
    %488 = vmatprep.subr.mxu0 %v138
    %489 = vmatpush1.msra.mxu0 %v137
    %490 = vmatprep.subr.mxu0 %v136
    %491 = vmatpush1.msra.mxu0 %v135
    %492 = vmatprep.subr.mxu0 %v134
    %493 = vmatpush1.msra.mxu0 %v133
    %494 = vmatprep.subr.mxu0 %v132
    %495 = vmatpush1.msra.mxu0 %v131
    %496 = vmatprep.subr.mxu0 %v130
    %497 = vmatpush1.msra.mxu0 %v129
    %498 = vmatprep.subr.mxu0 %v128
    %499 = vmatpush1.msra.mxu0 %v127
    %500 = vmatprep.subr.mxu0 %v126
    %501 = vmatpush1.msra.mxu0 %v125
    %502 = vmatprep.subr.mxu0 %v124
    %503 = vmatpush1.msra.mxu0 %v123
    %504 = vmatprep.subr.mxu0 0.0
    %505 = vmatpush2.msra.mxu0 0.0
    %506 = vmatprep.subr.mxu0 0.0
    %507 = vmatpush2.msra.mxu0 0.0
    %508 = vmatprep.subr.mxu0 0.0
    %509 = vmatpush2.msra.mxu0 0.0
    %510 = vmatprep.subr.mxu0 0.0
    %511 = vmatpush2.msra.mxu0 0.0
    %512 = vmatprep.subr.mxu0 0.0
    %513 = vmatpush2.msra.mxu0 0.0
    %514 = vmatprep.subr.mxu0 0.0
    %515 = vmatpush2.msra.mxu0 0.0
    %516 = vmatprep.subr.mxu0 0.0
    %517 = vmatpush2.msra.mxu0 0.0
    %518 = vmatprep.subr.mxu0 0.0
    %519 = vmatpush2.msra.mxu0 0.0
    %520 = vmatprep.subr.mxu0 0.0
    %521 = vmatpush2.msra.mxu0 0.0
    %522 = vmatprep.subr.mxu0 0.0
    %523 = vmatpush2.msra.mxu0 0.0
    %524 = vmatprep.subr.mxu0 0.0
    %525 = vmatpush2.msra.mxu0 0.0
    %526 = vmatprep.subr.mxu0 0.0
    %527 = vmatpush2.msra.mxu0 0.0
    %528 = vmatprep.subr.mxu0 0.0
    %529 = vmatpush2.msra.mxu0 0.0
    %530 = vmatprep.subr.mxu0 0.0
    %531 = vmatpush2.msra.mxu0 0.0
    %532 = vmatprep.subr.mxu0 0.0
    %533 = vmatpush2.msra.mxu0 0.0
    %534 = vmatprep.subr.mxu0 0.0
    %535 = vmatpush2.msra.mxu0 0.0
    %536 = vmatprep.mubr.f32.mxu0 0.0
    %537 = vmatmul.mubr.f32.gmra.mxu0 %v471
    %v538 = vpop.f32.mrf.mxu0
    %v539 = vadd.f32 %v160, %v538
    %v540 = vpop.f32.mrf.mxu0
    %v541 = vadd.f32 %v164, %v540
    %542 = vdwg.mxu0
    %v543 = vxor.u32 %v539, 2147483648
    %v544 = vmul.f32 %v543, 1.442695
    %v545 = vpow.pop %v544
    %v546 = vadd.f32 %v545, 1.0
    %v547 = vrcp.pop %v546
    %v548 = vmul.f32 1.0, %v547
    %v549 = vtanh.pop %v541
    %v550 = vxor.u32 %v541, 2147483648
    %v551 = vmul.f32 %v550, 1.442695
    %v552 = vpow.pop %v551
    %v553 = vadd.f32 %v552, 1.0
    %v554 = vrcp.pop %v553
    %v555 = vmul.f32 1.0, %v554
    %557 = vrot.lane.b32.xlu0 %v354, 64
    %v558 = vpop.permute.xlu0 %557
    %v560 = vmul.f32 %v548, %v558
    %v561 = vmul.f32 %v548, %v549
    %563 = vrot.lane.b32.xlu0 %v561, 64
    %v564 = vpop.permute.xlu0 %563
    %v566 = vadd.f32 %v560, %v564
    %v567 = vtanh.pop %v566
    %v568 = vmul.f32 %v555, %v567
    %s569 = smul.u32 1, 2
    %s570 = smul.addr %s569, 8
    %s571 = scalar_lea.vmem [#allocation2], %s570
    %v572 = vld [vmem:[%s571] sm:$0xff]
    %v573 = vld [vmem:[%s571 + $0x8] sm:$0xff]
    %v574 = vsel %vm360, %v465, 0
    %576 = vmatprep.subr.mxu0 0.0
    %577 = vmatpush1.msra.mxu0 0.0
    %578 = vmatprep.subr.mxu0 0.0
    %579 = vmatpush1.msra.mxu0 0.0
    %580 = vmatprep.subr.mxu0 0.0
    %581 = vmatpush1.msra.mxu0 0.0
    %582 = vmatprep.subr.mxu0 0.0
    %583 = vmatpush1.msra.mxu0 0.0
    %584 = vmatprep.subr.mxu0 0.0
    %585 = vmatpush1.msra.mxu0 0.0
    %586 = vmatprep.subr.mxu0 0.0
    %587 = vmatpush1.msra.mxu0 0.0
    %588 = vmatprep.subr.mxu0 0.0
    %589 = vmatpush1.msra.mxu0 0.0
    %590 = vmatprep.subr.mxu0 0.0
    %591 = vmatpush1.msra.mxu0 0.0
    %592 = vmatprep.subr.mxu0 %v122
    %593 = vmatpush1.msra.mxu0 %v121
    %594 = vmatprep.subr.mxu0 %v120
    %595 = vmatpush1.msra.mxu0 %v119
    %596 = vmatprep.subr.mxu0 %v118
    %597 = vmatpush1.msra.mxu0 %v117
    %598 = vmatprep.subr.mxu0 %v116
    %599 = vmatpush1.msra.mxu0 %v115
    %600 = vmatprep.subr.mxu0 %v114
    %601 = vmatpush1.msra.mxu0 %v113
    %602 = vmatprep.subr.mxu0 %v112
    %603 = vmatpush1.msra.mxu0 %v111
    %604 = vmatprep.subr.mxu0 %v110
    %605 = vmatpush1.msra.mxu0 %v109
    %606 = vmatprep.subr.mxu0 %v108
    %607 = vmatpush1.msra.mxu0 %v107
    %608 = vmatprep.subr.mxu0 0.0
    %609 = vmatpush2.msra.mxu0 0.0
    %610 = vmatprep.subr.mxu0 0.0
    %611 = vmatpush2.msra.mxu0 0.0
    %612 = vmatprep.subr.mxu0 0.0
    %613 = vmatpush2.msra.mxu0 0.0
    %614 = vmatprep.subr.mxu0 0.0
    %615 = vmatpush2.msra.mxu0 0.0
    %616 = vmatprep.subr.mxu0 0.0
    %617 = vmatpush2.msra.mxu0 0.0
    %618 = vmatprep.subr.mxu0 0.0
    %619 = vmatpush2.msra.mxu0 0.0
    %620 = vmatprep.subr.mxu0 0.0
    %621 = vmatpush2.msra.mxu0 0.0
    %622 = vmatprep.subr.mxu0 0.0
    %623 = vmatpush2.msra.mxu0 0.0
    %624 = vmatprep.subr.mxu0 0.0
    %625 = vmatpush2.msra.mxu0 0.0
    %626 = vmatprep.subr.mxu0 0.0
    %627 = vmatpush2.msra.mxu0 0.0
    %628 = vmatprep.subr.mxu0 0.0
    %629 = vmatpush2.msra.mxu0 0.0
    %630 = vmatprep.subr.mxu0 0.0
    %631 = vmatpush2.msra.mxu0 0.0
    %632 = vmatprep.subr.mxu0 0.0
    %633 = vmatpush2.msra.mxu0 0.0
    %634 = vmatprep.subr.mxu0 0.0
    %635 = vmatpush2.msra.mxu0 0.0
    %636 = vmatprep.subr.mxu0 0.0
    %637 = vmatpush2.msra.mxu0 0.0
    %638 = vmatprep.subr.mxu0 0.0
    %639 = vmatpush2.msra.mxu0 0.0
    %640 = vmatprep.mubr.f32.mxu0 0.0
    %641 = vmatmul.mubr.f32.gmra.mxu0 %v574
    %v642 = vpop.f32.mrf.mxu0
    %v643 = vadd.f32 0.0, %v642
    %v644 = vpop.f32.mrf.mxu0
    %v645 = vadd.f32 0.0, %v644
    %646 = vdwg.mxu0
    %v647 = vadd.f32 %v572, %v643
    %v648 = vadd.f32 %v573, %v645
    %v649 = vxor.u32 %v647, 2147483648
    %v650 = vmul.f32 %v649, 1.442695
    %v651 = vpow.pop %v650
    %v652 = vadd.f32 %v651, 1.0
    %v653 = vrcp.pop %v652
    %v654 = vmul.f32 1.0, %v653
    %v655 = vtanh.pop %v648
    %v656 = vxor.u32 %v648, 2147483648
    %v657 = vmul.f32 %v656, 1.442695
    %v658 = vpow.pop %v657
    %v659 = vadd.f32 %v658, 1.0
    %v660 = vrcp.pop %v659
    %v661 = vmul.f32 1.0, %v660
    %v662 = vmul.f32 %v654, %v460
    %v663 = vmul.f32 %v654, %v655
    %665 = vrot.lane.b32.xlu0 %v663, 64
    %v666 = vpop.permute.xlu0 %665
    %v668 = vadd.f32 %v662, %v666
    %v669 = vtanh.pop %v668
    %v670 = vmul.f32 %v661, %v669
    %672 = vrot.lane.b32.xlu0 %v670, 64
    %v673 = vpop.permute.xlu0 %672
    %v675 = vsel %vm360, %v673, %v568
    %676 = vmatprep.subr.mxu0 %v154
    %677 = vmatpush1.msra.mxu0 %v153
    %678 = vmatprep.subr.mxu0 %v152
    %679 = vmatpush1.msra.mxu0 %v151
    %680 = vmatprep.subr.mxu0 %v150
    %681 = vmatpush1.msra.mxu0 %v149
    %682 = vmatprep.subr.mxu0 %v148
    %683 = vmatpush1.msra.mxu0 %v147
    %684 = vmatprep.subr.mxu0 %v146
    %685 = vmatpush1.msra.mxu0 %v145
    %686 = vmatprep.subr.mxu0 %v144
    %687 = vmatpush1.msra.mxu0 %v143
    %688 = vmatprep.subr.mxu0 %v142
    %689 = vmatpush1.msra.mxu0 %v141
    %690 = vmatprep.subr.mxu0 %v140
    %691 = vmatpush1.msra.mxu0 %v139
    %692 = vmatprep.subr.mxu0 %v138
    %693 = vmatpush1.msra.mxu0 %v137
    %694 = vmatprep.subr.mxu0 %v136
    %695 = vmatpush1.msra.mxu0 %v135
    %696 = vmatprep.subr.mxu0 %v134
    %697 = vmatpush1.msra.mxu0 %v133
    %698 = vmatprep.subr.mxu0 %v132
    %699 = vmatpush1.msra.mxu0 %v131
    %700 = vmatprep.subr.mxu0 %v130
    %701 = vmatpush1.msra.mxu0 %v129
    %702 = vmatprep.subr.mxu0 %v128
    %703 = vmatpush1.msra.mxu0 %v127
    %704 = vmatprep.subr.mxu0 %v126
    %705 = vmatpush1.msra.mxu0 %v125
    %706 = vmatprep.subr.mxu0 %v124
    %707 = vmatpush1.msra.mxu0 %v123
    %708 = vmatprep.subr.mxu0 0.0
    %709 = vmatpush2.msra.mxu0 0.0
    %710 = vmatprep.subr.mxu0 0.0
    %711 = vmatpush2.msra.mxu0 0.0
    %712 = vmatprep.subr.mxu0 0.0
    %713 = vmatpush2.msra.mxu0 0.0
    %714 = vmatprep.subr.mxu0 0.0
    %715 = vmatpush2.msra.mxu0 0.0
    %716 = vmatprep.subr.mxu0 0.0
    %717 = vmatpush2.msra.mxu0 0.0
    %718 = vmatprep.subr.mxu0 0.0
    %719 = vmatpush2.msra.mxu0 0.0
    %720 = vmatprep.subr.mxu0 0.0
    %721 = vmatpush2.msra.mxu0 0.0
    %722 = vmatprep.subr.mxu0 0.0
    %723 = vmatpush2.msra.mxu0 0.0
    %724 = vmatprep.subr.mxu0 0.0
    %725 = vmatpush2.msra.mxu0 0.0
    %726 = vmatprep.subr.mxu0 0.0
    %727 = vmatpush2.msra.mxu0 0.0
    %728 = vmatprep.subr.mxu0 0.0
    %729 = vmatpush2.msra.mxu0 0.0
    %730 = vmatprep.subr.mxu0 0.0
    %731 = vmatpush2.msra.mxu0 0.0
    %732 = vmatprep.subr.mxu0 0.0
    %733 = vmatpush2.msra.mxu0 0.0
    %734 = vmatprep.subr.mxu0 0.0
    %735 = vmatpush2.msra.mxu0 0.0
    %736 = vmatprep.subr.mxu0 0.0
    %737 = vmatpush2.msra.mxu0 0.0
    %738 = vmatprep.subr.mxu0 0.0
    %739 = vmatpush2.msra.mxu0 0.0
    %740 = vmatprep.mubr.f32.mxu0 0.0
    %741 = vmatmul.mubr.f32.gmra.mxu0 %v675
    %v742 = vpop.f32.mrf.mxu0
    %v743 = vadd.f32 %v160, %v742
    %v744 = vpop.f32.mrf.mxu0
    %v745 = vadd.f32 %v164, %v744
    %746 = vdwg.mxu0
    %v747 = vxor.u32 %v743, 2147483648
    %v748 = vmul.f32 %v747, 1.442695
    %v749 = vpow.pop %v748
    %v750 = vadd.f32 %v749, 1.0
    %v751 = vrcp.pop %v750
    %v752 = vmul.f32 1.0, %v751
    %v753 = vtanh.pop %v745
    %v754 = vxor.u32 %v745, 2147483648
    %v755 = vmul.f32 %v754, 1.442695
    %v756 = vpow.pop %v755
    %v757 = vadd.f32 %v756, 1.0
    %v758 = vrcp.pop %v757
    %v759 = vmul.f32 1.0, %v758
    %v760 = vmul.f32 %v752, %v566
    %v761 = vmul.f32 %v752, %v753
    %763 = vrot.lane.b32.xlu0 %v761, 64
    %v764 = vpop.permute.xlu0 %763
    %v766 = vadd.f32 %v760, %v764
    %v767 = vtanh.pop %v766
    %v768 = vmul.f32 %v759, %v767
    %s769 = smul.u32 2, 2
    %s770 = smul.addr %s769, 8
    %s771 = scalar_lea.vmem [#allocation2], %s770
    %v772 = vld [vmem:[%s771] sm:$0xff]
    %v773 = vld [vmem:[%s771 + $0x8] sm:$0xff]
    %v774 = vsel %vm360, %v673, 0
    %776 = vmatprep.subr.mxu0 0.0
    %777 = vmatpush1.msra.mxu0 0.0
    %778 = vmatprep.subr.mxu0 0.0
    %779 = vmatpush1.msra.mxu0 0.0
    %780 = vmatprep.subr.mxu0 0.0
    %781 = vmatpush1.msra.mxu0 0.0
    %782 = vmatprep.subr.mxu0 0.0
    %783 = vmatpush1.msra.mxu0 0.0
    %784 = vmatprep.subr.mxu0 0.0
    %785 = vmatpush1.msra.mxu0 0.0
    %786 = vmatprep.subr.mxu0 0.0
    %787 = vmatpush1.msra.mxu0 0.0
    %788 = vmatprep.subr.mxu0 0.0
    %789 = vmatpush1.msra.mxu0 0.0
    %790 = vmatprep.subr.mxu0 0.0
    %791 = vmatpush1.msra.mxu0 0.0
    %792 = vmatprep.subr.mxu0 %v122
    %793 = vmatpush1.msra.mxu0 %v121
    %794 = vmatprep.subr.mxu0 %v120
    %795 = vmatpush1.msra.mxu0 %v119
    %796 = vmatprep.subr.mxu0 %v118
    %797 = vmatpush1.msra.mxu0 %v117
    %798 = vmatprep.subr.mxu0 %v116
    %799 = vmatpush1.msra.mxu0 %v115
    %800 = vmatprep.subr.mxu0 %v114
    %801 = vmatpush1.msra.mxu0 %v113
    %802 = vmatprep.subr.mxu0 %v112
    %803 = vmatpush1.msra.mxu0 %v111
    %804 = vmatprep.subr.mxu0 %v110
    %805 = vmatpush1.msra.mxu0 %v109
    %806 = vmatprep.subr.mxu0 %v108
    %807 = vmatpush1.msra.mxu0 %v107
    %808 = vmatprep.subr.mxu0 0.0
    %809 = vmatpush2.msra.mxu0 0.0
    %810 = vmatprep.subr.mxu0 0.0
    %811 = vmatpush2.msra.mxu0 0.0
    %812 = vmatprep.subr.mxu0 0.0
    %813 = vmatpush2.msra.mxu0 0.0
    %814 = vmatprep.subr.mxu0 0.0
    %815 = vmatpush2.msra.mxu0 0.0
    %816 = vmatprep.subr.mxu0 0.0
    %817 = vmatpush2.msra.mxu0 0.0
    %818 = vmatprep.subr.mxu0 0.0
    %819 = vmatpush2.msra.mxu0 0.0
    %820 = vmatprep.subr.mxu0 0.0
    %821 = vmatpush2.msra.mxu0 0.0
    %822 = vmatprep.subr.mxu0 0.0
    %823 = vmatpush2.msra.mxu0 0.0
    %824 = vmatprep.subr.mxu0 0.0
    %825 = vmatpush2.msra.mxu0 0.0
    %826 = vmatprep.subr.mxu0 0.0
    %827 = vmatpush2.msra.mxu0 0.0
    %828 = vmatprep.subr.mxu0 0.0
    %829 = vmatpush2.msra.mxu0 0.0
    %830 = vmatprep.subr.mxu0 0.0
    %831 = vmatpush2.msra.mxu0 0.0
    %832 = vmatprep.subr.mxu0 0.0
    %833 = vmatpush2.msra.mxu0 0.0
    %834 = vmatprep.subr.mxu0 0.0
    %835 = vmatpush2.msra.mxu0 0.0
    %836 = vmatprep.subr.mxu0 0.0
    %837 = vmatpush2.msra.mxu0 0.0
    %838 = vmatprep.subr.mxu0 0.0
    %839 = vmatpush2.msra.mxu0 0.0
    %840 = vmatprep.mubr.f32.mxu0 0.0
    %841 = vmatmul.mubr.f32.gmra.mxu0 %v774
    %v842 = vpop.f32.mrf.mxu0
    %v843 = vadd.f32 0.0, %v842
    %v844 = vpop.f32.mrf.mxu0
    %v845 = vadd.f32 0.0, %v844
    %846 = vdwg.mxu0
    %v847 = vadd.f32 %v772, %v843
    %v848 = vadd.f32 %v773, %v845
    %v849 = vxor.u32 %v847, 2147483648
    %v850 = vmul.f32 %v849, 1.442695
    %v851 = vpow.pop %v850
    %v852 = vadd.f32 %v851, 1.0
    %v853 = vrcp.pop %v852
    %v854 = vmul.f32 1.0, %v853
    %v855 = vtanh.pop %v848
    %v856 = vxor.u32 %v848, 2147483648
    %v857 = vmul.f32 %v856, 1.442695
    %v858 = vpow.pop %v857
    %v859 = vadd.f32 %v858, 1.0
    %v860 = vrcp.pop %v859
    %v861 = vmul.f32 1.0, %v860
    %v862 = vmul.f32 %v854, %v668
    %v863 = vmul.f32 %v854, %v855
    %865 = vrot.lane.b32.xlu0 %v863, 64
    %v866 = vpop.permute.xlu0 %865
    %v868 = vadd.f32 %v862, %v866
    %v869 = vtanh.pop %v868
    %v870 = vmul.f32 %v861, %v869
    %872 = vrot.lane.b32.xlu0 %v870, 64
    %v873 = vpop.permute.xlu0 %872
    %v875 = vsel %vm360, %v873, %v768
    %876 = vmatprep.subr.mxu0 %v154
    %877 = vmatpush1.msra.mxu0 %v153
    %878 = vmatprep.subr.mxu0 %v152
    %879 = vmatpush1.msra.mxu0 %v151
    %880 = vmatprep.subr.mxu0 %v150
    %881 = vmatpush1.msra.mxu0 %v149
    %882 = vmatprep.subr.mxu0 %v148
    %883 = vmatpush1.msra.mxu0 %v147
    %884 = vmatprep.subr.mxu0 %v146
    %885 = vmatpush1.msra.mxu0 %v145
    %886 = vmatprep.subr.mxu0 %v144
    %887 = vmatpush1.msra.mxu0 %v143
    %888 = vmatprep.subr.mxu0 %v142
    %889 = vmatpush1.msra.mxu0 %v141
    %890 = vmatprep.subr.mxu0 %v140
    %891 = vmatpush1.msra.mxu0 %v139
    %892 = vmatprep.subr.mxu0 %v138
    %893 = vmatpush1.msra.mxu0 %v137
    %894 = vmatprep.subr.mxu0 %v136
    %895 = vmatpush1.msra.mxu0 %v135
    %896 = vmatprep.subr.mxu0 %v134
    %897 = vmatpush1.msra.mxu0 %v133
    %898 = vmatprep.subr.mxu0 %v132
    %899 = vmatpush1.msra.mxu0 %v131
    %900 = vmatprep.subr.mxu0 %v130
    %901 = vmatpush1.msra.mxu0 %v129
    %902 = vmatprep.subr.mxu0 %v128
    %903 = vmatpush1.msra.mxu0 %v127
    %904 = vmatprep.subr.mxu0 %v126
    %905 = vmatpush1.msra.mxu0 %v125
    %906 = vmatprep.subr.mxu0 %v124
    %907 = vmatpush1.msra.mxu0 %v123
    %908 = vmatprep.subr.mxu0 0.0
    %909 = vmatpush2.msra.mxu0 0.0
    %910 = vmatprep.subr.mxu0 0.0
    %911 = vmatpush2.msra.mxu0 0.0
    %912 = vmatprep.subr.mxu0 0.0
    %913 = vmatpush2.msra.mxu0 0.0
    %914 = vmatprep.subr.mxu0 0.0
    %915 = vmatpush2.msra.mxu0 0.0
    %916 = vmatprep.subr.mxu0 0.0
    %917 = vmatpush2.msra.mxu0 0.0
    %918 = vmatprep.subr.mxu0 0.0
    %919 = vmatpush2.msra.mxu0 0.0
    %920 = vmatprep.subr.mxu0 0.0
    %921 = vmatpush2.msra.mxu0 0.0
    %922 = vmatprep.subr.mxu0 0.0
    %923 = vmatpush2.msra.mxu0 0.0
    %924 = vmatprep.subr.mxu0 0.0
    %925 = vmatpush2.msra.mxu0 0.0
    %926 = vmatprep.subr.mxu0 0.0
    %927 = vmatpush2.msra.mxu0 0.0
    %928 = vmatprep.subr.mxu0 0.0
    %929 = vmatpush2.msra.mxu0 0.0
    %930 = vmatprep.subr.mxu0 0.0
    %931 = vmatpush2.msra.mxu0 0.0
    %932 = vmatprep.subr.mxu0 0.0
    %933 = vmatpush2.msra.mxu0 0.0
    %934 = vmatprep.subr.mxu0 0.0
    %935 = vmatpush2.msra.mxu0 0.0
    %936 = vmatprep.subr.mxu0 0.0
    %937 = vmatpush2.msra.mxu0 0.0
    %938 = vmatprep.subr.mxu0 0.0
    %939 = vmatpush2.msra.mxu0 0.0
    %940 = vmatprep.mubr.f32.mxu0 0.0
    %941 = vmatmul.mubr.f32.gmra.mxu0 %v875
    %v942 = vpop.f32.mrf.mxu0
    %v943 = vadd.f32 %v160, %v942
    %v944 = vpop.f32.mrf.mxu0
    %v945 = vadd.f32 %v164, %v944
    %946 = vdwg.mxu0
    %v947 = vxor.u32 %v943, 2147483648
    %v948 = vmul.f32 %v947, 1.442695
    %v949 = vpow.pop %v948
    %v950 = vadd.f32 %v949, 1.0
    %v951 = vrcp.pop %v950
    %v952 = vmul.f32 1.0, %v951
    %v953 = vtanh.pop %v945
    %v954 = vxor.u32 %v945, 2147483648
    %v955 = vmul.f32 %v954, 1.442695
    %v956 = vpow.pop %v955
    %v957 = vadd.f32 %v956, 1.0
    %v958 = vrcp.pop %v957
    %v959 = vmul.f32 1.0, %v958
    %v960 = vmul.f32 %v952, %v766
    %v961 = vmul.f32 %v952, %v953
    %963 = vrot.lane.b32.xlu0 %v961, 64
    %v964 = vpop.permute.xlu0 %963
    %v966 = vadd.f32 %v960, %v964
    %v967 = vtanh.pop %v966
    %v968 = vmul.f32 %v959, %v967
    %s969 = smul.u32 3, 2
    %s970 = smul.addr %s969, 8
    %s971 = scalar_lea.vmem [#allocation2], %s970
    %v972 = vld [vmem:[%s971] sm:$0xff]
    %v973 = vld [vmem:[%s971 + $0x8] sm:$0xff]
    %v974 = vsel %vm360, %v873, 0
    %976 = vmatprep.subr.mxu0 0.0
    %977 = vmatpush1.msra.mxu0 0.0
    %978 = vmatprep.subr.mxu0 0.0
    %979 = vmatpush1.msra.mxu0 0.0
    %980 = vmatprep.subr.mxu0 0.0
    %981 = vmatpush1.msra.mxu0 0.0
    %982 = vmatprep.subr.mxu0 0.0
    %983 = vmatpush1.msra.mxu0 0.0
    %984 = vmatprep.subr.mxu0 0.0
    %985 = vmatpush1.msra.mxu0 0.0
    %986 = vmatprep.subr.mxu0 0.0
    %987 = vmatpush1.msra.mxu0 0.0
    %988 = vmatprep.subr.mxu0 0.0
    %989 = vmatpush1.msra.mxu0 0.0
    %990 = vmatprep.subr.mxu0 0.0
    %991 = vmatpush1.msra.mxu0 0.0
    %992 = vmatprep.subr.mxu0 %v122
    %993 = vmatpush1.msra.mxu0 %v121
    %994 = vmatprep.subr.mxu0 %v120
    %995 = vmatpush1.msra.mxu0 %v119
    %996 = vmatprep.subr.mxu0 %v118
    %997 = vmatpush1.msra.mxu0 %v117
    %998 = vmatprep.subr.mxu0 %v116
    %999 = vmatpush1.msra.mxu0 %v115
    %1000 = vmatprep.subr.mxu0 %v114
    %1001 = vmatpush1.msra.mxu0 %v113
    %1002 = vmatprep.subr.mxu0 %v112
    %1003 = vmatpush1.msra.mxu0 %v111
    %1004 = vmatprep.subr.mxu0 %v110
    %1005 = vmatpush1.msra.mxu0 %v109
    %1006 = vmatprep.subr.mxu0 %v108
    %1007 = vmatpush1.msra.mxu0 %v107
    %1008 = vmatprep.subr.mxu0 0.0
    %1009 = vmatpush2.msra.mxu0 0.0
    %1010 = vmatprep.subr.mxu0 0.0
    %1011 = vmatpush2.msra.mxu0 0.0
    %1012 = vmatprep.subr.mxu0 0.0
    %1013 = vmatpush2.msra.mxu0 0.0
    %1014 = vmatprep.subr.mxu0 0.0
    %1015 = vmatpush2.msra.mxu0 0.0
    %1016 = vmatprep.subr.mxu0 0.0
    %1017 = vmatpush2.msra.mxu0 0.0
    %1018 = vmatprep.subr.mxu0 0.0
    %1019 = vmatpush2.msra.mxu0 0.0
    %1020 = vmatprep.subr.mxu0 0.0
    %1021 = vmatpush2.msra.mxu0 0.0
    %1022 = vmatprep.subr.mxu0 0.0
    %1023 = vmatpush2.msra.mxu0 0.0
    %1024 = vmatprep.subr.mxu0 0.0
    %1025 = vmatpush2.msra.mxu0 0.0
    %1026 = vmatprep.subr.mxu0 0.0
    %1027 = vmatpush2.msra.mxu0 0.0
    %1028 = vmatprep.subr.mxu0 0.0
    %1029 = vmatpush2.msra.mxu0 0.0
    %1030 = vmatprep.subr.mxu0 0.0
    %1031 = vmatpush2.msra.mxu0 0.0
    %1032 = vmatprep.subr.mxu0 0.0
    %1033 = vmatpush2.msra.mxu0 0.0
    %1034 = vmatprep.subr.mxu0 0.0
    %1035 = vmatpush2.msra.mxu0 0.0
    %1036 = vmatprep.subr.mxu0 0.0
    %1037 = vmatpush2.msra.mxu0 0.0
    %1038 = vmatprep.subr.mxu0 0.0
    %1039 = vmatpush2.msra.mxu0 0.0
    %1040 = vmatprep.mubr.f32.mxu0 0.0
    %1041 = vmatmul.mubr.f32.gmra.mxu0 %v974
    %v1042 = vpop.f32.mrf.mxu0
    %v1043 = vadd.f32 0.0, %v1042
    %v1044 = vpop.f32.mrf.mxu0
    %v1045 = vadd.f32 0.0, %v1044
    %1046 = vdwg.mxu0
    %v1047 = vadd.f32 %v972, %v1043
    %v1048 = vadd.f32 %v973, %v1045
    %v1049 = vxor.u32 %v1047, 2147483648
    %v1050 = vmul.f32 %v1049, 1.442695
    %v1051 = vpow.pop %v1050
    %v1052 = vadd.f32 %v1051, 1.0
    %v1053 = vrcp.pop %v1052
    %v1054 = vmul.f32 1.0, %v1053
    %v1055 = vtanh.pop %v1048
    %v1056 = vxor.u32 %v1048, 2147483648
    %v1057 = vmul.f32 %v1056, 1.442695
    %v1058 = vpow.pop %v1057
    %v1059 = vadd.f32 %v1058, 1.0
    %v1060 = vrcp.pop %v1059
    %v1061 = vmul.f32 1.0, %v1060
    %v1062 = vmul.f32 %v1054, %v868
    %v1063 = vmul.f32 %v1054, %v1055
    %1065 = vrot.lane.b32.xlu0 %v1063, 64
    %v1066 = vpop.permute.xlu0 %1065
    %v1068 = vadd.f32 %v1062, %v1066
    %v1069 = vtanh.pop %v1068
    %v1070 = vmul.f32 %v1061, %v1069
    %1072 = vrot.lane.b32.xlu0 %v1070, 64
    %v1073 = vpop.permute.xlu0 %1072
    %v1075 = vsel %vm360, %v1073, %v968
    %1076 = vmatprep.subr.mxu0 %v154
    %1077 = vmatpush1.msra.mxu0 %v153
    %1078 = vmatprep.subr.mxu0 %v152
    %1079 = vmatpush1.msra.mxu0 %v151
    %1080 = vmatprep.subr.mxu0 %v150
    %1081 = vmatpush1.msra.mxu0 %v149
    %1082 = vmatprep.subr.mxu0 %v148
    %1083 = vmatpush1.msra.mxu0 %v147
    %1084 = vmatprep.subr.mxu0 %v146
    %1085 = vmatpush1.msra.mxu0 %v145
    %1086 = vmatprep.subr.mxu0 %v144
    %1087 = vmatpush1.msra.mxu0 %v143
    %1088 = vmatprep.subr.mxu0 %v142
    %1089 = vmatpush1.msra.mxu0 %v141
    %1090 = vmatprep.subr.mxu0 %v140
    %1091 = vmatpush1.msra.mxu0 %v139
    %1092 = vmatprep.subr.mxu0 %v138
    %1093 = vmatpush1.msra.mxu0 %v137
    %1094 = vmatprep.subr.mxu0 %v136
    %1095 = vmatpush1.msra.mxu0 %v135
    %1096 = vmatprep.subr.mxu0 %v134
    %1097 = vmatpush1.msra.mxu0 %v133
    %1098 = vmatprep.subr.mxu0 %v132
    %1099 = vmatpush1.msra.mxu0 %v131
    %1100 = vmatprep.subr.mxu0 %v130
    %1101 = vmatpush1.msra.mxu0 %v129
    %1102 = vmatprep.subr.mxu0 %v128
    %1103 = vmatpush1.msra.mxu0 %v127
    %1104 = vmatprep.subr.mxu0 %v126
    %1105 = vmatpush1.msra.mxu0 %v125
    %1106 = vmatprep.subr.mxu0 %v124
    %1107 = vmatpush1.msra.mxu0 %v123
    %1108 = vmatprep.subr.mxu0 0.0
    %1109 = vmatpush2.msra.mxu0 0.0
    %1110 = vmatprep.subr.mxu0 0.0
    %1111 = vmatpush2.msra.mxu0 0.0
    %1112 = vmatprep.subr.mxu0 0.0
    %1113 = vmatpush2.msra.mxu0 0.0
    %1114 = vmatprep.subr.mxu0 0.0
    %1115 = vmatpush2.msra.mxu0 0.0
    %1116 = vmatprep.subr.mxu0 0.0
    %1117 = vmatpush2.msra.mxu0 0.0
    %1118 = vmatprep.subr.mxu0 0.0
    %1119 = vmatpush2.msra.mxu0 0.0
    %1120 = vmatprep.subr.mxu0 0.0
    %1121 = vmatpush2.msra.mxu0 0.0
    %1122 = vmatprep.subr.mxu0 0.0
    %1123 = vmatpush2.msra.mxu0 0.0
    %1124 = vmatprep.subr.mxu0 0.0
    %1125 = vmatpush2.msra.mxu0 0.0
    %1126 = vmatprep.subr.mxu0 0.0
    %1127 = vmatpush2.msra.mxu0 0.0
    %1128 = vmatprep.subr.mxu0 0.0
    %1129 = vmatpush2.msra.mxu0 0.0
    %1130 = vmatprep.subr.mxu0 0.0
    %1131 = vmatpush2.msra.mxu0 0.0
    %1132 = vmatprep.subr.mxu0 0.0
    %1133 = vmatpush2.msra.mxu0 0.0
    %1134 = vmatprep.subr.mxu0 0.0
    %1135 = vmatpush2.msra.mxu0 0.0
    %1136 = vmatprep.subr.mxu0 0.0
    %1137 = vmatpush2.msra.mxu0 0.0
    %1138 = vmatprep.subr.mxu0 0.0
    %1139 = vmatpush2.msra.mxu0 0.0
    %1140 = vmatprep.mubr.f32.mxu0 0.0
    %1141 = vmatmul.mubr.f32.gmra.mxu0 %v1075
    %v1142 = vpop.f32.mrf.mxu0
    %v1143 = vadd.f32 %v160, %v1142
    %v1144 = vpop.f32.mrf.mxu0
    %v1145 = vadd.f32 %v164, %v1144
    %1146 = vdwg.mxu0
    %v1147 = vxor.u32 %v1143, 2147483648
    %v1148 = vmul.f32 %v1147, 1.442695
    %v1149 = vpow.pop %v1148
    %v1150 = vadd.f32 %v1149, 1.0
    %v1151 = vrcp.pop %v1150
    %v1152 = vmul.f32 1.0, %v1151
    %v1153 = vtanh.pop %v1145
    %v1154 = vxor.u32 %v1145, 2147483648
    %v1155 = vmul.f32 %v1154, 1.442695
    %v1156 = vpow.pop %v1155
    %v1157 = vadd.f32 %v1156, 1.0
    %v1158 = vrcp.pop %v1157
    %v1159 = vmul.f32 1.0, %v1158
    %v1160 = vmul.f32 %v1152, %v966
    %v1161 = vmul.f32 %v1152, %v1153
    %1163 = vrot.lane.b32.xlu0 %v1161, 64
    %v1164 = vpop.permute.xlu0 %1163
    %v1166 = vadd.f32 %v1160, %v1164
    %v1167 = vtanh.pop %v1166
    %v1168 = vmul.f32 %v1159, %v1167
    %s1169 = smul.u32 4, 2
    %s1170 = smul.addr %s1169, 8
    %s1171 = scalar_lea.vmem [#allocation2], %s1170
    %v1172 = vld [vmem:[%s1171] sm:$0xff]
    %v1173 = vld [vmem:[%s1171 + $0x8] sm:$0xff]
    %v1174 = vsel %vm360, %v1073, 0
    %1176 = vmatprep.subr.mxu0 0.0
    %1177 = vmatpush1.msra.mxu0 0.0
    %1178 = vmatprep.subr.mxu0 0.0
    %1179 = vmatpush1.msra.mxu0 0.0
    %1180 = vmatprep.subr.mxu0 0.0
    %1181 = vmatpush1.msra.mxu0 0.0
    %1182 = vmatprep.subr.mxu0 0.0
    %1183 = vmatpush1.msra.mxu0 0.0
    %1184 = vmatprep.subr.mxu0 0.0
    %1185 = vmatpush1.msra.mxu0 0.0
    %1186 = vmatprep.subr.mxu0 0.0
    %1187 = vmatpush1.msra.mxu0 0.0
    %1188 = vmatprep.subr.mxu0 0.0
    %1189 = vmatpush1.msra.mxu0 0.0
    %1190 = vmatprep.subr.mxu0 0.0
    %1191 = vmatpush1.msra.mxu0 0.0
    %1192 = vmatprep.subr.mxu0 %v122
    %1193 = vmatpush1.msra.mxu0 %v121
    %1194 = vmatprep.subr.mxu0 %v120
    %1195 = vmatpush1.msra.mxu0 %v119
    %1196 = vmatprep.subr.mxu0 %v118
    %1197 = vmatpush1.msra.mxu0 %v117
    %1198 = vmatprep.subr.mxu0 %v116
    %1199 = vmatpush1.msra.mxu0 %v115
    %1200 = vmatprep.subr.mxu0 %v114
    %1201 = vmatpush1.msra.mxu0 %v113
    %1202 = vmatprep.subr.mxu0 %v112
    %1203 = vmatpush1.msra.mxu0 %v111
    %1204 = vmatprep.subr.mxu0 %v110
    %1205 = vmatpush1.msra.mxu0 %v109
    %1206 = vmatprep.subr.mxu0 %v108
    %1207 = vmatpush1.msra.mxu0 %v107
    %1208 = vmatprep.subr.mxu0 0.0
    %1209 = vmatpush2.msra.mxu0 0.0
    %1210 = vmatprep.subr.mxu0 0.0
    %1211 = vmatpush2.msra.mxu0 0.0
    %1212 = vmatprep.subr.mxu0 0.0
    %1213 = vmatpush2.msra.mxu0 0.0
    %1214 = vmatprep.subr.mxu0 0.0
    %1215 = vmatpush2.msra.mxu0 0.0
    %1216 = vmatprep.subr.mxu0 0.0
    %1217 = vmatpush2.msra.mxu0 0.0
    %1218 = vmatprep.subr.mxu0 0.0
    %1219 = vmatpush2.msra.mxu0 0.0
    %1220 = vmatprep.subr.mxu0 0.0
    %1221 = vmatpush2.msra.mxu0 0.0
    %1222 = vmatprep.subr.mxu0 0.0
    %1223 = vmatpush2.msra.mxu0 0.0
    %1224 = vmatprep.subr.mxu0 0.0
    %1225 = vmatpush2.msra.mxu0 0.0
    %1226 = vmatprep.subr.mxu0 0.0
    %1227 = vmatpush2.msra.mxu0 0.0
    %1228 = vmatprep.subr.mxu0 0.0
    %1229 = vmatpush2.msra.mxu0 0.0
    %1230 = vmatprep.subr.mxu0 0.0
    %1231 = vmatpush2.msra.mxu0 0.0
    %1232 = vmatprep.subr.mxu0 0.0
    %1233 = vmatpush2.msra.mxu0 0.0
    %1234 = vmatprep.subr.mxu0 0.0
    %1235 = vmatpush2.msra.mxu0 0.0
    %1236 = vmatprep.subr.mxu0 0.0
    %1237 = vmatpush2.msra.mxu0 0.0
    %1238 = vmatprep.subr.mxu0 0.0
    %1239 = vmatpush2.msra.mxu0 0.0
    %1240 = vmatprep.mubr.f32.mxu0 0.0
    %1241 = vmatmul.mubr.f32.gmra.mxu0 %v1174
    %v1242 = vpop.f32.mrf.mxu0
    %v1243 = vadd.f32 0.0, %v1242
    %v1244 = vpop.f32.mrf.mxu0
    %v1245 = vadd.f32 0.0, %v1244
    %1246 = vdwg.mxu0
    %v1247 = vadd.f32 %v1172, %v1243
    %v1248 = vadd.f32 %v1173, %v1245
    %v1249 = vxor.u32 %v1247, 2147483648
    %v1250 = vmul.f32 %v1249, 1.442695
    %v1251 = vpow.pop %v1250
    %v1252 = vadd.f32 %v1251, 1.0
    %v1253 = vrcp.pop %v1252
    %v1254 = vmul.f32 1.0, %v1253
    %v1255 = vtanh.pop %v1248
    %v1256 = vxor.u32 %v1248, 2147483648
    %v1257 = vmul.f32 %v1256, 1.442695
    %v1258 = vpow.pop %v1257
    %v1259 = vadd.f32 %v1258, 1.0
    %v1260 = vrcp.pop %v1259
    %v1261 = vmul.f32 1.0, %v1260
    %v1262 = vmul.f32 %v1254, %v1068
    %v1263 = vmul.f32 %v1254, %v1255
    %1265 = vrot.lane.b32.xlu0 %v1263, 64
    %v1266 = vpop.permute.xlu0 %1265
    %v1268 = vadd.f32 %v1262, %v1266
    %v1269 = vtanh.pop %v1268
    %v1270 = vmul.f32 %v1261, %v1269
    %1272 = vrot.lane.b32.xlu0 %v1270, 64
    %v1273 = vpop.permute.xlu0 %1272
    %v1275 = vsel %vm360, %v1273, %v1168
    %1276 = vmatprep.subr.mxu0 %v154
    %1277 = vmatpush1.msra.mxu0 %v153
    %1278 = vmatprep.subr.mxu0 %v152
    %1279 = vmatpush1.msra.mxu0 %v151
    %1280 = vmatprep.subr.mxu0 %v150
    %1281 = vmatpush1.msra.mxu0 %v149
    %1282 = vmatprep.subr.mxu0 %v148
    %1283 = vmatpush1.msra.mxu0 %v147
    %1284 = vmatprep.subr.mxu0 %v146
    %1285 = vmatpush1.msra.mxu0 %v145
    %1286 = vmatprep.subr.mxu0 %v144
    %1287 = vmatpush1.msra.mxu0 %v143
    %1288 = vmatprep.subr.mxu0 %v142
    %1289 = vmatpush1.msra.mxu0 %v141
    %1290 = vmatprep.subr.mxu0 %v140
    %1291 = vmatpush1.msra.mxu0 %v139
    %1292 = vmatprep.subr.mxu0 %v138
    %1293 = vmatpush1.msra.mxu0 %v137
    %1294 = vmatprep.subr.mxu0 %v136
    %1295 = vmatpush1.msra.mxu0 %v135
    %1296 = vmatprep.subr.mxu0 %v134
    %1297 = vmatpush1.msra.mxu0 %v133
    %1298 = vmatprep.subr.mxu0 %v132
    %1299 = vmatpush1.msra.mxu0 %v131
    %1300 = vmatprep.subr.mxu0 %v130
    %1301 = vmatpush1.msra.mxu0 %v129
    %1302 = vmatprep.subr.mxu0 %v128
    %1303 = vmatpush1.msra.mxu0 %v127
    %1304 = vmatprep.subr.mxu0 %v126
    %1305 = vmatpush1.msra.mxu0 %v125
    %1306 = vmatprep.subr.mxu0 %v124
    %1307 = vmatpush1.msra.mxu0 %v123
    %1308 = vmatprep.subr.mxu0 0.0
    %1309 = vmatpush2.msra.mxu0 0.0
    %1310 = vmatprep.subr.mxu0 0.0
    %1311 = vmatpush2.msra.mxu0 0.0
    %1312 = vmatprep.subr.mxu0 0.0
    %1313 = vmatpush2.msra.mxu0 0.0
    %1314 = vmatprep.subr.mxu0 0.0
    %1315 = vmatpush2.msra.mxu0 0.0
    %1316 = vmatprep.subr.mxu0 0.0
    %1317 = vmatpush2.msra.mxu0 0.0
    %1318 = vmatprep.subr.mxu0 0.0
    %1319 = vmatpush2.msra.mxu0 0.0
    %1320 = vmatprep.subr.mxu0 0.0
    %1321 = vmatpush2.msra.mxu0 0.0
    %1322 = vmatprep.subr.mxu0 0.0
    %1323 = vmatpush2.msra.mxu0 0.0
    %1324 = vmatprep.subr.mxu0 0.0
    %1325 = vmatpush2.msra.mxu0 0.0
    %1326 = vmatprep.subr.mxu0 0.0
    %1327 = vmatpush2.msra.mxu0 0.0
    %1328 = vmatprep.subr.mxu0 0.0
    %1329 = vmatpush2.msra.mxu0 0.0
    %1330 = vmatprep.subr.mxu0 0.0
    %1331 = vmatpush2.msra.mxu0 0.0
    %1332 = vmatprep.subr.mxu0 0.0
    %1333 = vmatpush2.msra.mxu0 0.0
    %1334 = vmatprep.subr.mxu0 0.0
    %1335 = vmatpush2.msra.mxu0 0.0
    %1336 = vmatprep.subr.mxu0 0.0
    %1337 = vmatpush2.msra.mxu0 0.0
    %1338 = vmatprep.subr.mxu0 0.0
    %1339 = vmatpush2.msra.mxu0 0.0
    %1340 = vmatprep.mubr.f32.mxu0 0.0
    %1341 = vmatmul.mubr.f32.gmra.mxu0 %v1275
    %v1342 = vpop.f32.mrf.mxu0
    %v1343 = vadd.f32 %v160, %v1342
    %v1344 = vpop.f32.mrf.mxu0
    %v1345 = vadd.f32 %v164, %v1344
    %1346 = vdwg.mxu0
    %v1347 = vxor.u32 %v1343, 2147483648
    %v1348 = vmul.f32 %v1347, 1.442695
    %v1349 = vpow.pop %v1348
    %v1350 = vadd.f32 %v1349, 1.0
    %v1351 = vrcp.pop %v1350
    %v1352 = vmul.f32 1.0, %v1351
    %v1353 = vtanh.pop %v1345
    %v1354 = vxor.u32 %v1345, 2147483648
    %v1355 = vmul.f32 %v1354, 1.442695
    %v1356 = vpow.pop %v1355
    %v1357 = vadd.f32 %v1356, 1.0
    %v1358 = vrcp.pop %v1357
    %v1359 = vmul.f32 1.0, %v1358
    %v1360 = vmul.f32 %v1352, %v1166
    %v1361 = vmul.f32 %v1352, %v1353
    %1363 = vrot.lane.b32.xlu0 %v1361, 64
    %v1364 = vpop.permute.xlu0 %1363
    %v1366 = vadd.f32 %v1360, %v1364
    %v1367 = vtanh.pop %v1366
    %v1368 = vmul.f32 %v1359, %v1367
    %s1369 = smul.u32 5, 2
    %s1370 = smul.addr %s1369, 8
    %s1371 = scalar_lea.vmem [#allocation2], %s1370
    %v1372 = vld [vmem:[%s1371] sm:$0xff]
    %v1373 = vld [vmem:[%s1371 + $0x8] sm:$0xff]
    %v1374 = vsel %vm360, %v1273, 0
    %1376 = vmatprep.subr.mxu0 0.0
    %1377 = vmatpush1.msra.mxu0 0.0
    %1378 = vmatprep.subr.mxu0 0.0
    %1379 = vmatpush1.msra.mxu0 0.0
    %1380 = vmatprep.subr.mxu0 0.0
    %1381 = vmatpush1.msra.mxu0 0.0
    %1382 = vmatprep.subr.mxu0 0.0
    %1383 = vmatpush1.msra.mxu0 0.0
    %1384 = vmatprep.subr.mxu0 0.0
    %1385 = vmatpush1.msra.mxu0 0.0
    %1386 = vmatprep.subr.mxu0 0.0
    %1387 = vmatpush1.msra.mxu0 0.0
    %1388 = vmatprep.subr.mxu0 0.0
    %1389 = vmatpush1.msra.mxu0 0.0
    %1390 = vmatprep.subr.mxu0 0.0
    %1391 = vmatpush1.msra.mxu0 0.0
    %1392 = vmatprep.subr.mxu0 %v122
    %1393 = vmatpush1.msra.mxu0 %v121
    %1394 = vmatprep.subr.mxu0 %v120
    %1395 = vmatpush1.msra.mxu0 %v119
    %1396 = vmatprep.subr.mxu0 %v118
    %1397 = vmatpush1.msra.mxu0 %v117
    %1398 = vmatprep.subr.mxu0 %v116
    %1399 = vmatpush1.msra.mxu0 %v115
    %1400 = vmatprep.subr.mxu0 %v114
    %1401 = vmatpush1.msra.mxu0 %v113
    %1402 = vmatprep.subr.mxu0 %v112
    %1403 = vmatpush1.msra.mxu0 %v111
    %1404 = vmatprep.subr.mxu0 %v110
    %1405 = vmatpush1.msra.mxu0 %v109
    %1406 = vmatprep.subr.mxu0 %v108
    %1407 = vmatpush1.msra.mxu0 %v107
    %1408 = vmatprep.subr.mxu0 0.0
    %1409 = vmatpush2.msra.mxu0 0.0
    %1410 = vmatprep.subr.mxu0 0.0
    %1411 = vmatpush2.msra.mxu0 0.0
    %1412 = vmatprep.subr.mxu0 0.0
    %1413 = vmatpush2.msra.mxu0 0.0
    %1414 = vmatprep.subr.mxu0 0.0
    %1415 = vmatpush2.msra.mxu0 0.0
    %1416 = vmatprep.subr.mxu0 0.0
    %1417 = vmatpush2.msra.mxu0 0.0
    %1418 = vmatprep.subr.mxu0 0.0
    %1419 = vmatpush2.msra.mxu0 0.0
    %1420 = vmatprep.subr.mxu0 0.0
    %1421 = vmatpush2.msra.mxu0 0.0
    %1422 = vmatprep.subr.mxu0 0.0
    %1423 = vmatpush2.msra.mxu0 0.0
    %1424 = vmatprep.subr.mxu0 0.0
    %1425 = vmatpush2.msra.mxu0 0.0
    %1426 = vmatprep.subr.mxu0 0.0
    %1427 = vmatpush2.msra.mxu0 0.0
    %1428 = vmatprep.subr.mxu0 0.0
    %1429 = vmatpush2.msra.mxu0 0.0
    %1430 = vmatprep.subr.mxu0 0.0
    %1431 = vmatpush2.msra.mxu0 0.0
    %1432 = vmatprep.subr.mxu0 0.0
    %1433 = vmatpush2.msra.mxu0 0.0
    %1434 = vmatprep.subr.mxu0 0.0
    %1435 = vmatpush2.msra.mxu0 0.0
    %1436 = vmatprep.subr.mxu0 0.0
    %1437 = vmatpush2.msra.mxu0 0.0
    %1438 = vmatprep.subr.mxu0 0.0
    %1439 = vmatpush2.msra.mxu0 0.0
    %1440 = vmatprep.mubr.f32.mxu0 0.0
    %1441 = vmatmul.mubr.f32.gmra.mxu0 %v1374
    %v1442 = vpop.f32.mrf.mxu0
    %v1443 = vadd.f32 0.0, %v1442
    %v1444 = vpop.f32.mrf.mxu0
    %v1445 = vadd.f32 0.0, %v1444
    %1446 = vdwg.mxu0
    %v1447 = vadd.f32 %v1372, %v1443
    %v1448 = vadd.f32 %v1373, %v1445
    %v1449 = vxor.u32 %v1447, 2147483648
    %v1450 = vmul.f32 %v1449, 1.442695
    %v1451 = vpow.pop %v1450
    %v1452 = vadd.f32 %v1451, 1.0
    %v1453 = vrcp.pop %v1452
    %v1454 = vmul.f32 1.0, %v1453
    %v1455 = vtanh.pop %v1448
    %v1456 = vxor.u32 %v1448, 2147483648
    %v1457 = vmul.f32 %v1456, 1.442695
    %v1458 = vpow.pop %v1457
    %v1459 = vadd.f32 %v1458, 1.0
    %v1460 = vrcp.pop %v1459
    %v1461 = vmul.f32 1.0, %v1460
    %v1462 = vmul.f32 %v1454, %v1268
    %v1463 = vmul.f32 %v1454, %v1455
    %1465 = vrot.lane.b32.xlu0 %v1463, 64
    %v1466 = vpop.permute.xlu0 %1465
    %v1468 = vadd.f32 %v1462, %v1466
    %v1469 = vtanh.pop %v1468
    %v1470 = vmul.f32 %v1461, %v1469
    %1472 = vrot.lane.b32.xlu0 %v1470, 64
    %v1473 = vpop.permute.xlu0 %1472
    %v1475 = vsel %vm360, %v1473, %v1368
    %1476 = vmatprep.subr.mxu0 %v154
    %1477 = vmatpush1.msra.mxu0 %v153
    %1478 = vmatprep.subr.mxu0 %v152
    %1479 = vmatpush1.msra.mxu0 %v151
    %1480 = vmatprep.subr.mxu0 %v150
    %1481 = vmatpush1.msra.mxu0 %v149
    %1482 = vmatprep.subr.mxu0 %v148
    %1483 = vmatpush1.msra.mxu0 %v147
    %1484 = vmatprep.subr.mxu0 %v146
    %1485 = vmatpush1.msra.mxu0 %v145
    %1486 = vmatprep.subr.mxu0 %v144
    %1487 = vmatpush1.msra.mxu0 %v143
    %1488 = vmatprep.subr.mxu0 %v142
    %1489 = vmatpush1.msra.mxu0 %v141
    %1490 = vmatprep.subr.mxu0 %v140
    %1491 = vmatpush1.msra.mxu0 %v139
    %1492 = vmatprep.subr.mxu0 %v138
    %1493 = vmatpush1.msra.mxu0 %v137
    %1494 = vmatprep.subr.mxu0 %v136
    %1495 = vmatpush1.msra.mxu0 %v135
    %1496 = vmatprep.subr.mxu0 %v134
    %1497 = vmatpush1.msra.mxu0 %v133
    %1498 = vmatprep.subr.mxu0 %v132
    %1499 = vmatpush1.msra.mxu0 %v131
    %1500 = vmatprep.subr.mxu0 %v130
    %1501 = vmatpush1.msra.mxu0 %v129
    %1502 = vmatprep.subr.mxu0 %v128
    %1503 = vmatpush1.msra.mxu0 %v127
    %1504 = vmatprep.subr.mxu0 %v126
    %1505 = vmatpush1.msra.mxu0 %v125
    %1506 = vmatprep.subr.mxu0 %v124
    %1507 = vmatpush1.msra.mxu0 %v123
    %1508 = vmatprep.subr.mxu0 0.0
    %1509 = vmatpush2.msra.mxu0 0.0
    %1510 = vmatprep.subr.mxu0 0.0
    %1511 = vmatpush2.msra.mxu0 0.0
    %1512 = vmatprep.subr.mxu0 0.0
    %1513 = vmatpush2.msra.mxu0 0.0
    %1514 = vmatprep.subr.mxu0 0.0
    %1515 = vmatpush2.msra.mxu0 0.0
    %1516 = vmatprep.subr.mxu0 0.0
    %1517 = vmatpush2.msra.mxu0 0.0
    %1518 = vmatprep.subr.mxu0 0.0
    %1519 = vmatpush2.msra.mxu0 0.0
    %1520 = vmatprep.subr.mxu0 0.0
    %1521 = vmatpush2.msra.mxu0 0.0
    %1522 = vmatprep.subr.mxu0 0.0
    %1523 = vmatpush2.msra.mxu0 0.0
    %1524 = vmatprep.subr.mxu0 0.0
    %1525 = vmatpush2.msra.mxu0 0.0
    %1526 = vmatprep.subr.mxu0 0.0
    %1527 = vmatpush2.msra.mxu0 0.0
    %1528 = vmatprep.subr.mxu0 0.0
    %1529 = vmatpush2.msra.mxu0 0.0
    %1530 = vmatprep.subr.mxu0 0.0
    %1531 = vmatpush2.msra.mxu0 0.0
    %1532 = vmatprep.subr.mxu0 0.0
    %1533 = vmatpush2.msra.mxu0 0.0
    %1534 = vmatprep.subr.mxu0 0.0
    %1535 = vmatpush2.msra.mxu0 0.0
    %1536 = vmatprep.subr.mxu0 0.0
    %1537 = vmatpush2.msra.mxu0 0.0
    %1538 = vmatprep.subr.mxu0 0.0
    %1539 = vmatpush2.msra.mxu0 0.0
    %1540 = vmatprep.mubr.f32.mxu0 0.0
    %1541 = vmatmul.mubr.f32.gmra.mxu0 %v1475
    %v1542 = vpop.f32.mrf.mxu0
    %v1543 = vadd.f32 %v160, %v1542
    %v1544 = vpop.f32.mrf.mxu0
    %v1545 = vadd.f32 %v164, %v1544
    %1546 = vdwg.mxu0
    %v1547 = vxor.u32 %v1543, 2147483648
    %v1548 = vmul.f32 %v1547, 1.442695
    %v1549 = vpow.pop %v1548
    %v1550 = vadd.f32 %v1549, 1.0
    %v1551 = vrcp.pop %v1550
    %v1552 = vmul.f32 1.0, %v1551
    %v1553 = vtanh.pop %v1545
    %v1554 = vxor.u32 %v1545, 2147483648
    %v1555 = vmul.f32 %v1554, 1.442695
    %v1556 = vpow.pop %v1555
    %v1557 = vadd.f32 %v1556, 1.0
    %v1558 = vrcp.pop %v1557
    %v1559 = vmul.f32 1.0, %v1558
    %v1560 = vmul.f32 %v1552, %v1366
    %v1561 = vmul.f32 %v1552, %v1553
    %1563 = vrot.lane.b32.xlu0 %v1561, 64
    %v1564 = vpop.permute.xlu0 %1563
    %v1566 = vadd.f32 %v1560, %v1564
    %v1567 = vtanh.pop %v1566
    %v1568 = vmul.f32 %v1559, %v1567
    %s1569 = smul.u32 6, 2
    %s1570 = smul.addr %s1569, 8
    %s1571 = scalar_lea.vmem [#allocation2], %s1570
    %v1572 = vld [vmem:[%s1571] sm:$0xff]
    %v1573 = vld [vmem:[%s1571 + $0x8] sm:$0xff]
    %v1574 = vsel %vm360, %v1473, 0
    %1576 = vmatprep.subr.mxu0 0.0
    %1577 = vmatpush1.msra.mxu0 0.0
    %1578 = vmatprep.subr.mxu0 0.0
    %1579 = vmatpush1.msra.mxu0 0.0
    %1580 = vmatprep.subr.mxu0 0.0
    %1581 = vmatpush1.msra.mxu0 0.0
    %1582 = vmatprep.subr.mxu0 0.0
    %1583 = vmatpush1.msra.mxu0 0.0
    %1584 = vmatprep.subr.mxu0 0.0
    %1585 = vmatpush1.msra.mxu0 0.0
    %1586 = vmatprep.subr.mxu0 0.0
    %1587 = vmatpush1.msra.mxu0 0.0
    %1588 = vmatprep.subr.mxu0 0.0
    %1589 = vmatpush1.msra.mxu0 0.0
    %1590 = vmatprep.subr.mxu0 0.0
    %1591 = vmatpush1.msra.mxu0 0.0
    %1592 = vmatprep.subr.mxu0 %v122
    %1593 = vmatpush1.msra.mxu0 %v121
    %1594 = vmatprep.subr.mxu0 %v120
    %1595 = vmatpush1.msra.mxu0 %v119
    %1596 = vmatprep.subr.mxu0 %v118
    %1597 = vmatpush1.msra.mxu0 %v117
    %1598 = vmatprep.subr.mxu0 %v116
    %1599 = vmatpush1.msra.mxu0 %v115
    %1600 = vmatprep.subr.mxu0 %v114
    %1601 = vmatpush1.msra.mxu0 %v113
    %1602 = vmatprep.subr.mxu0 %v112
    %1603 = vmatpush1.msra.mxu0 %v111
    %1604 = vmatprep.subr.mxu0 %v110
    %1605 = vmatpush1.msra.mxu0 %v109
    %1606 = vmatprep.subr.mxu0 %v108
    %1607 = vmatpush1.msra.mxu0 %v107
    %1608 = vmatprep.subr.mxu0 0.0
    %1609 = vmatpush2.msra.mxu0 0.0
    %1610 = vmatprep.subr.mxu0 0.0
    %1611 = vmatpush2.msra.mxu0 0.0
    %1612 = vmatprep.subr.mxu0 0.0
    %1613 = vmatpush2.msra.mxu0 0.0
    %1614 = vmatprep.subr.mxu0 0.0
    %1615 = vmatpush2.msra.mxu0 0.0
    %1616 = vmatprep.subr.mxu0 0.0
    %1617 = vmatpush2.msra.mxu0 0.0
    %1618 = vmatprep.subr.mxu0 0.0
    %1619 = vmatpush2.msra.mxu0 0.0
    %1620 = vmatprep.subr.mxu0 0.0
    %1621 = vmatpush2.msra.mxu0 0.0
    %1622 = vmatprep.subr.mxu0 0.0
    %1623 = vmatpush2.msra.mxu0 0.0
    %1624 = vmatprep.subr.mxu0 0.0
    %1625 = vmatpush2.msra.mxu0 0.0
    %1626 = vmatprep.subr.mxu0 0.0
    %1627 = vmatpush2.msra.mxu0 0.0
    %1628 = vmatprep.subr.mxu0 0.0
    %1629 = vmatpush2.msra.mxu0 0.0
    %1630 = vmatprep.subr.mxu0 0.0
    %1631 = vmatpush2.msra.mxu0 0.0
    %1632 = vmatprep.subr.mxu0 0.0
    %1633 = vmatpush2.msra.mxu0 0.0
    %1634 = vmatprep.subr.mxu0 0.0
    %1635 = vmatpush2.msra.mxu0 0.0
    %1636 = vmatprep.subr.mxu0 0.0
    %1637 = vmatpush2.msra.mxu0 0.0
    %1638 = vmatprep.subr.mxu0 0.0
    %1639 = vmatpush2.msra.mxu0 0.0
    %1640 = vmatprep.mubr.f32.mxu0 0.0
    %1641 = vmatmul.mubr.f32.gmra.mxu0 %v1574
    %v1642 = vpop.f32.mrf.mxu0
    %v1643 = vadd.f32 0.0, %v1642
    %v1644 = vpop.f32.mrf.mxu0
    %v1645 = vadd.f32 0.0, %v1644
    %1646 = vdwg.mxu0
    %v1647 = vadd.f32 %v1572, %v1643
    %v1648 = vadd.f32 %v1573, %v1645
    %v1649 = vxor.u32 %v1647, 2147483648
    %v1650 = vmul.f32 %v1649, 1.442695
    %v1651 = vpow.pop %v1650
    %v1652 = vadd.f32 %v1651, 1.0
    %v1653 = vrcp.pop %v1652
    %v1654 = vmul.f32 1.0, %v1653
    %v1655 = vtanh.pop %v1648
    %v1656 = vxor.u32 %v1648, 2147483648
    %v1657 = vmul.f32 %v1656, 1.442695
    %v1658 = vpow.pop %v1657
    %v1659 = vadd.f32 %v1658, 1.0
    %v1660 = vrcp.pop %v1659
    %v1661 = vmul.f32 1.0, %v1660
    %v1662 = vmul.f32 %v1654, %v1468
    %v1663 = vmul.f32 %v1654, %v1655
    %1665 = vrot.lane.b32.xlu0 %v1663, 64
    %v1666 = vpop.permute.xlu0 %1665
    %v1668 = vadd.f32 %v1662, %v1666
    %v1669 = vtanh.pop %v1668
    %v1670 = vmul.f32 %v1661, %v1669
    %1672 = vrot.lane.b32.xlu0 %v1670, 64
    %v1673 = vpop.permute.xlu0 %1672
    %v1675 = vsel %vm360, %v1673, %v1568
    %1676 = vmatprep.subr.mxu0 %v154
    %1677 = vmatpush1.msra.mxu0 %v153
    %1678 = vmatprep.subr.mxu0 %v152
    %1679 = vmatpush1.msra.mxu0 %v151
    %1680 = vmatprep.subr.mxu0 %v150
    %1681 = vmatpush1.msra.mxu0 %v149
    %1682 = vmatprep.subr.mxu0 %v148
    %1683 = vmatpush1.msra.mxu0 %v147
    %1684 = vmatprep.subr.mxu0 %v146
    %1685 = vmatpush1.msra.mxu0 %v145
    %1686 = vmatprep.subr.mxu0 %v144
    %1687 = vmatpush1.msra.mxu0 %v143
    %1688 = vmatprep.subr.mxu0 %v142
    %1689 = vmatpush1.msra.mxu0 %v141
    %1690 = vmatprep.subr.mxu0 %v140
    %1691 = vmatpush1.msra.mxu0 %v139
    %1692 = vmatprep.subr.mxu0 %v138
    %1693 = vmatpush1.msra.mxu0 %v137
    %1694 = vmatprep.subr.mxu0 %v136
    %1695 = vmatpush1.msra.mxu0 %v135
    %1696 = vmatprep.subr.mxu0 %v134
    %1697 = vmatpush1.msra.mxu0 %v133
    %1698 = vmatprep.subr.mxu0 %v132
    %1699 = vmatpush1.msra.mxu0 %v131
    %1700 = vmatprep.subr.mxu0 %v130
    %1701 = vmatpush1.msra.mxu0 %v129
    %1702 = vmatprep.subr.mxu0 %v128
    %1703 = vmatpush1.msra.mxu0 %v127
    %1704 = vmatprep.subr.mxu0 %v126
    %1705 = vmatpush1.msra.mxu0 %v125
    %1706 = vmatprep.subr.mxu0 %v124
    %1707 = vmatpush1.msra.mxu0 %v123
    %1708 = vmatprep.subr.mxu0 0.0
    %1709 = vmatpush2.msra.mxu0 0.0
    %1710 = vmatprep.subr.mxu0 0.0
    %1711 = vmatpush2.msra.mxu0 0.0
    %1712 = vmatprep.subr.mxu0 0.0
    %1713 = vmatpush2.msra.mxu0 0.0
    %1714 = vmatprep.subr.mxu0 0.0
    %1715 = vmatpush2.msra.mxu0 0.0
    %1716 = vmatprep.subr.mxu0 0.0
    %1717 = vmatpush2.msra.mxu0 0.0
    %1718 = vmatprep.subr.mxu0 0.0
    %1719 = vmatpush2.msra.mxu0 0.0
    %1720 = vmatprep.subr.mxu0 0.0
    %1721 = vmatpush2.msra.mxu0 0.0
    %1722 = vmatprep.subr.mxu0 0.0
    %1723 = vmatpush2.msra.mxu0 0.0
    %1724 = vmatprep.subr.mxu0 0.0
    %1725 = vmatpush2.msra.mxu0 0.0
    %1726 = vmatprep.subr.mxu0 0.0
    %1727 = vmatpush2.msra.mxu0 0.0
    %1728 = vmatprep.subr.mxu0 0.0
    %1729 = vmatpush2.msra.mxu0 0.0
    %1730 = vmatprep.subr.mxu0 0.0
    %1731 = vmatpush2.msra.mxu0 0.0
    %1732 = vmatprep.subr.mxu0 0.0
    %1733 = vmatpush2.msra.mxu0 0.0
    %1734 = vmatprep.subr.mxu0 0.0
    %1735 = vmatpush2.msra.mxu0 0.0
    %1736 = vmatprep.subr.mxu0 0.0
    %1737 = vmatpush2.msra.mxu0 0.0
    %1738 = vmatprep.subr.mxu0 0.0
    %1739 = vmatpush2.msra.mxu0 0.0
    %1740 = vmatprep.mubr.f32.mxu0 0.0
    %1741 = vmatmul.mubr.f32.gmra.mxu0 %v1675
    %v1742 = vpop.f32.mrf.mxu0
    %v1743 = vadd.f32 %v160, %v1742
    %v1744 = vpop.f32.mrf.mxu0
    %v1745 = vadd.f32 %v164, %v1744
    %1746 = vdwg.mxu0
    %v1747 = vxor.u32 %v1743, 2147483648
    %v1748 = vmul.f32 %v1747, 1.442695
    %v1749 = vpow.pop %v1748
    %v1750 = vadd.f32 %v1749, 1.0
    %v1751 = vrcp.pop %v1750
    %v1752 = vmul.f32 1.0, %v1751
    %v1753 = vtanh.pop %v1745
    %v1754 = vxor.u32 %v1745, 2147483648
    %v1755 = vmul.f32 %v1754, 1.442695
    %v1756 = vpow.pop %v1755
    %v1757 = vadd.f32 %v1756, 1.0
    %v1758 = vrcp.pop %v1757
    %v1759 = vmul.f32 1.0, %v1758
    %v1760 = vmul.f32 %v1752, %v1566
    %v1761 = vmul.f32 %v1752, %v1753
    %1763 = vrot.lane.b32.xlu0 %v1761, 64
    %v1764 = vpop.permute.xlu0 %1763
    %v1766 = vadd.f32 %v1760, %v1764
    %v1767 = vtanh.pop %v1766
    %v1768 = vmul.f32 %v1759, %v1767
    %s1769 = smul.u32 7, 2
    %s1770 = smul.addr %s1769, 8
    %s1771 = scalar_lea.vmem [#allocation2], %s1770
    %v1772 = vld [vmem:[%s1771] sm:$0xff]
    %v1773 = vld [vmem:[%s1771 + $0x8] sm:$0xff]
    %v1774 = vsel %vm360, %v1673, 0
    %1776 = vmatprep.subr.mxu0 0.0
    %1777 = vmatpush1.msra.mxu0 0.0
    %1778 = vmatprep.subr.mxu0 0.0
    %1779 = vmatpush1.msra.mxu0 0.0
    %1780 = vmatprep.subr.mxu0 0.0
    %1781 = vmatpush1.msra.mxu0 0.0
    %1782 = vmatprep.subr.mxu0 0.0
    %1783 = vmatpush1.msra.mxu0 0.0
    %1784 = vmatprep.subr.mxu0 0.0
    %1785 = vmatpush1.msra.mxu0 0.0
    %1786 = vmatprep.subr.mxu0 0.0
    %1787 = vmatpush1.msra.mxu0 0.0
    %1788 = vmatprep.subr.mxu0 0.0
    %1789 = vmatpush1.msra.mxu0 0.0
    %1790 = vmatprep.subr.mxu0 0.0
    %1791 = vmatpush1.msra.mxu0 0.0
    %1792 = vmatprep.subr.mxu0 %v122
    %1793 = vmatpush1.msra.mxu0 %v121
    %1794 = vmatprep.subr.mxu0 %v120
    %1795 = vmatpush1.msra.mxu0 %v119
    %1796 = vmatprep.subr.mxu0 %v118
    %1797 = vmatpush1.msra.mxu0 %v117
    %1798 = vmatprep.subr.mxu0 %v116
    %1799 = vmatpush1.msra.mxu0 %v115
    %1800 = vmatprep.subr.mxu0 %v114
    %1801 = vmatpush1.msra.mxu0 %v113
    %1802 = vmatprep.subr.mxu0 %v112
    %1803 = vmatpush1.msra.mxu0 %v111
    %1804 = vmatprep.subr.mxu0 %v110
    %1805 = vmatpush1.msra.mxu0 %v109
    %1806 = vmatprep.subr.mxu0 %v108
    %1807 = vmatpush1.msra.mxu0 %v107
    %1808 = vmatprep.subr.mxu0 0.0
    %1809 = vmatpush2.msra.mxu0 0.0
    %1810 = vmatprep.subr.mxu0 0.0
    %1811 = vmatpush2.msra.mxu0 0.0
    %1812 = vmatprep.subr.mxu0 0.0
    %1813 = vmatpush2.msra.mxu0 0.0
    %1814 = vmatprep.subr.mxu0 0.0
    %1815 = vmatpush2.msra.mxu0 0.0
    %1816 = vmatprep.subr.mxu0 0.0
    %1817 = vmatpush2.msra.mxu0 0.0
    %1818 = vmatprep.subr.mxu0 0.0
    %1819 = vmatpush2.msra.mxu0 0.0
    %1820 = vmatprep.subr.mxu0 0.0
    %1821 = vmatpush2.msra.mxu0 0.0
    %1822 = vmatprep.subr.mxu0 0.0
    %1823 = vmatpush2.msra.mxu0 0.0
    %1824 = vmatprep.subr.mxu0 0.0
    %1825 = vmatpush2.msra.mxu0 0.0
    %1826 = vmatprep.subr.mxu0 0.0
    %1827 = vmatpush2.msra.mxu0 0.0
    %1828 = vmatprep.subr.mxu0 0.0
    %1829 = vmatpush2.msra.mxu0 0.0
    %1830 = vmatprep.subr.mxu0 0.0
    %1831 = vmatpush2.msra.mxu0 0.0
    %1832 = vmatprep.subr.mxu0 0.0
    %1833 = vmatpush2.msra.mxu0 0.0
    %1834 = vmatprep.subr.mxu0 0.0
    %1835 = vmatpush2.msra.mxu0 0.0
    %1836 = vmatprep.subr.mxu0 0.0
    %1837 = vmatpush2.msra.mxu0 0.0
    %1838 = vmatprep.subr.mxu0 0.0
    %1839 = vmatpush2.msra.mxu0 0.0
    %1840 = vmatprep.mubr.f32.mxu0 0.0
    %1841 = vmatmul.mubr.f32.gmra.mxu0 %v1774
    %v1842 = vpop.f32.mrf.mxu0
    %v1843 = vadd.f32 0.0, %v1842
    %v1844 = vpop.f32.mrf.mxu0
    %v1845 = vadd.f32 0.0, %v1844
    %1846 = vdwg.mxu0
    %v1847 = vadd.f32 %v1772, %v1843
    %v1848 = vadd.f32 %v1773, %v1845
    %v1849 = vxor.u32 %v1847, 2147483648
    %v1850 = vmul.f32 %v1849, 1.442695
    %v1851 = vpow.pop %v1850
    %v1852 = vadd.f32 %v1851, 1.0
    %v1853 = vrcp.pop %v1852
    %v1854 = vmul.f32 1.0, %v1853
    %v1855 = vtanh.pop %v1848
    %v1856 = vxor.u32 %v1848, 2147483648
    %v1857 = vmul.f32 %v1856, 1.442695
    %v1858 = vpow.pop %v1857
    %v1859 = vadd.f32 %v1858, 1.0
    %v1860 = vrcp.pop %v1859
    %v1861 = vmul.f32 1.0, %v1860
    %v1862 = vmul.f32 %v1854, %v1668
    %v1863 = vmul.f32 %v1854, %v1855
    %1865 = vrot.lane.b32.xlu0 %v1863, 64
    %v1866 = vpop.permute.xlu0 %1865
    %v1868 = vadd.f32 %v1862, %v1866
    %v1869 = vtanh.pop %v1868
    %v1870 = vmul.f32 %v1861, %v1869
    %1872 = vrot.lane.b32.xlu0 %v1870, 64
    %v1873 = vpop.permute.xlu0 %1872
    %v1875 = vsel %vm360, %v1873, %v1768
    %1876 = vmatprep.subr.mxu0 %v154
    %1877 = vmatpush1.msra.mxu0 %v153
    %1878 = vmatprep.subr.mxu0 %v152
    %1879 = vmatpush1.msra.mxu0 %v151
    %1880 = vmatprep.subr.mxu0 %v150
    %1881 = vmatpush1.msra.mxu0 %v149
    %1882 = vmatprep.subr.mxu0 %v148
    %1883 = vmatpush1.msra.mxu0 %v147
    %1884 = vmatprep.subr.mxu0 %v146
    %1885 = vmatpush1.msra.mxu0 %v145
    %1886 = vmatprep.subr.mxu0 %v144
    %1887 = vmatpush1.msra.mxu0 %v143
    %1888 = vmatprep.subr.mxu0 %v142
    %1889 = vmatpush1.msra.mxu0 %v141
    %1890 = vmatprep.subr.mxu0 %v140
    %1891 = vmatpush1.msra.mxu0 %v139
    %1892 = vmatprep.subr.mxu0 %v138
    %1893 = vmatpush1.msra.mxu0 %v137
    %1894 = vmatprep.subr.mxu0 %v136
    %1895 = vmatpush1.msra.mxu0 %v135
    %1896 = vmatprep.subr.mxu0 %v134
    %1897 = vmatpush1.msra.mxu0 %v133
    %1898 = vmatprep.subr.mxu0 %v132
    %1899 = vmatpush1.msra.mxu0 %v131
    %1900 = vmatprep.subr.mxu0 %v130
    %1901 = vmatpush1.msra.mxu0 %v129
    %1902 = vmatprep.subr.mxu0 %v128
    %1903 = vmatpush1.msra.mxu0 %v127
    %1904 = vmatprep.subr.mxu0 %v126
    %1905 = vmatpush1.msra.mxu0 %v125
    %1906 = vmatprep.subr.mxu0 %v124
    %1907 = vmatpush1.msra.mxu0 %v123
    %1908 = vmatprep.subr.mxu0 0.0
    %1909 = vmatpush2.msra.mxu0 0.0
    %1910 = vmatprep.subr.mxu0 0.0
    %1911 = vmatpush2.msra.mxu0 0.0
    %1912 = vmatprep.subr.mxu0 0.0
    %1913 = vmatpush2.msra.mxu0 0.0
    %1914 = vmatprep.subr.mxu0 0.0
    %1915 = vmatpush2.msra.mxu0 0.0
    %1916 = vmatprep.subr.mxu0 0.0
    %1917 = vmatpush2.msra.mxu0 0.0
    %1918 = vmatprep.subr.mxu0 0.0
    %1919 = vmatpush2.msra.mxu0 0.0
    %1920 = vmatprep.subr.mxu0 0.0
    %1921 = vmatpush2.msra.mxu0 0.0
    %1922 = vmatprep.subr.mxu0 0.0
    %1923 = vmatpush2.msra.mxu0 0.0
    %1924 = vmatprep.subr.mxu0 0.0
    %1925 = vmatpush2.msra.mxu0 0.0
    %1926 = vmatprep.subr.mxu0 0.0
    %1927 = vmatpush2.msra.mxu0 0.0
    %1928 = vmatprep.subr.mxu0 0.0
    %1929 = vmatpush2.msra.mxu0 0.0
    %1930 = vmatprep.subr.mxu0 0.0
    %1931 = vmatpush2.msra.mxu0 0.0
    %1932 = vmatprep.subr.mxu0 0.0
    %1933 = vmatpush2.msra.mxu0 0.0
    %1934 = vmatprep.subr.mxu0 0.0
    %1935 = vmatpush2.msra.mxu0 0.0
    %1936 = vmatprep.subr.mxu0 0.0
    %1937 = vmatpush2.msra.mxu0 0.0
    %1938 = vmatprep.subr.mxu0 0.0
    %1939 = vmatpush2.msra.mxu0 0.0
    %1940 = vmatprep.mubr.f32.mxu0 0.0
    %1941 = vmatmul.mubr.f32.gmra.mxu0 %v1875
    %v1942 = vpop.f32.mrf.mxu0
    %v1943 = vadd.f32 %v160, %v1942
    %v1944 = vpop.f32.mrf.mxu0
    %v1945 = vadd.f32 %v164, %v1944
    %1946 = vdwg.mxu0
    %v1947 = vxor.u32 %v1943, 2147483648
    %v1948 = vmul.f32 %v1947, 1.442695
    %v1949 = vpow.pop %v1948
    %v1950 = vadd.f32 %v1949, 1.0
    %v1951 = vrcp.pop %v1950
    %v1952 = vmul.f32 1.0, %v1951
    %v1953 = vtanh.pop %v1945
    %v1954 = vxor.u32 %v1945, 2147483648
    %v1955 = vmul.f32 %v1954, 1.442695
    %v1956 = vpow.pop %v1955
    %v1957 = vadd.f32 %v1956, 1.0
    %v1958 = vrcp.pop %v1957
    %v1959 = vmul.f32 1.0, %v1958
    %v1960 = vmul.f32 %v1952, %v1766
    %v1961 = vmul.f32 %v1952, %v1953
    %1963 = vrot.lane.b32.xlu0 %v1961, 64
    %v1964 = vpop.permute.xlu0 %1963
    %v1966 = vadd.f32 %v1960, %v1964
    %v1967 = vtanh.pop %v1966
    %v1968 = vmul.f32 %v1959, %v1967
    %1969 = vst.msk [vmem:[#allocation3] sm:$0xff] %vm360, %v1873
    %1971 = vrot.lane.b32.xlu0 %v1868, 64
    %v1972 = vpop.permute.xlu0 %1971
    %1974 = vst.msk [vmem:[%s349] sm:$0xff] %vm360, %v1972
    %1976 = vrot.lane.b32.xlu0 %v1968, 64
    %v1977 = vpop.permute.xlu0 %1976
    %1979 = vst.msk [vmem:[%s351] sm:$0xff] %vm360, %v1977
    %1981 = vrot.lane.b32.xlu0 %v1966, 64
    %v1982 = vpop.permute.xlu0 %1981
    %1984 = vst.msk [vmem:[%s353] sm:$0xff] %vm360, %v1982
    // Predicated region
    $region58: #{tpu_custom_call.1} parent=1 // pred_check
      %p1985 = pneg %p98
    $region59: #{tpu_custom_call.1} parent=1 // pred_check_branch
      %1987 = sbr.rel (%p1985) target = $region61
    $region60: #{tpu_custom_call.1} parent=1 // pred_region
      %v1988 = vld [vmem:[#allocation12] sm:$0xff]
      %v1989 = vld [vmem:[#allocation12 + $0x8] sm:$0xff]
      %v1990 = vld [vmem:[#allocation12 + $0x10] sm:$0xff]
      %v1991 = vld [vmem:[#allocation12 + $0x18] sm:$0xff]
      %v1992 = vld [vmem:[#allocation12 + $0x20] sm:$0xff]
      %v1993 = vld [vmem:[#allocation12 + $0x28] sm:$0xff]
      %v1994 = vld [vmem:[#allocation12 + $0x30] sm:$0xff]
      %v1995 = vld [vmem:[#allocation12 + $0x38] sm:$0xff]
      %v1996 = vld [vmem:[%s7] sm:$0x1]
      %v1998 = vlaneseq
      %v1999 = vshrl.u32 %v1998, 7
      %v2000 = vsub.s32 0, %v1999
      %v2001 = vrot.slane %v1996, %v2000
      %v2003 = vsel %vm360, %v1977, 0
      %2005 = vmatprep.subr.mxu0 0.0
      %2006 = vmatpush1.msra.mxu0 0.0
      %2007 = vmatprep.subr.mxu0 0.0
      %2008 = vmatpush1.msra.mxu0 0.0
      %2009 = vmatprep.subr.mxu0 0.0
      %2010 = vmatpush1.msra.mxu0 0.0
      %2011 = vmatprep.subr.mxu0 0.0
      %2012 = vmatpush1.msra.mxu0 0.0
      %2013 = vmatprep.subr.mxu0 0.0
      %2014 = vmatpush1.msra.mxu0 0.0
      %2015 = vmatprep.subr.mxu0 0.0
      %2016 = vmatpush1.msra.mxu0 0.0
      %2017 = vmatprep.subr.mxu0 0.0
      %2018 = vmatpush1.msra.mxu0 0.0
      %2019 = vmatprep.subr.mxu0 0.0
      %2020 = vmatpush1.msra.mxu0 0.0
      %2021 = vmatprep.subr.mxu0 0.0
      %2022 = vmatpush1.msra.mxu0 %v1995
      %2023 = vmatprep.subr.mxu0 0.0
      %2024 = vmatpush1.msra.mxu0 %v1994
      %2025 = vmatprep.subr.mxu0 0.0
      %2026 = vmatpush1.msra.mxu0 %v1993
      %2027 = vmatprep.subr.mxu0 0.0
      %2028 = vmatpush1.msra.mxu0 %v1992
      %2029 = vmatprep.subr.mxu0 0.0
      %2030 = vmatpush1.msra.mxu0 %v1991
      %2031 = vmatprep.subr.mxu0 0.0
      %2032 = vmatpush1.msra.mxu0 %v1990
      %2033 = vmatprep.subr.mxu0 0.0
      %2034 = vmatpush1.msra.mxu0 %v1989
      %2035 = vmatprep.subr.mxu0 0.0
      %2036 = vmatpush1.msra.mxu0 %v1988
      %2037 = vmatprep.subr.mxu0 0.0
      %2038 = vmatpush2.msra.mxu0 0.0
      %2039 = vmatprep.subr.mxu0 0.0
      %2040 = vmatpush2.msra.mxu0 0.0
      %2041 = vmatprep.subr.mxu0 0.0
      %2042 = vmatpush2.msra.mxu0 0.0
      %2043 = vmatprep.subr.mxu0 0.0
      %2044 = vmatpush2.msra.mxu0 0.0
      %2045 = vmatprep.subr.mxu0 0.0
      %2046 = vmatpush2.msra.mxu0 0.0
      %2047 = vmatprep.subr.mxu0 0.0
      %2048 = vmatpush2.msra.mxu0 0.0
      %2049 = vmatprep.subr.mxu0 0.0
      %2050 = vmatpush2.msra.mxu0 0.0
      %2051 = vmatprep.subr.mxu0 0.0
      %2052 = vmatpush2.msra.mxu0 0.0
      %2053 = vmatprep.subr.mxu0 0.0
      %2054 = vmatpush2.msra.mxu0 0.0
      %2055 = vmatprep.subr.mxu0 0.0
      %2056 = vmatpush2.msra.mxu0 0.0
      %2057 = vmatprep.subr.mxu0 0.0
      %2058 = vmatpush2.msra.mxu0 0.0
      %2059 = vmatprep.subr.mxu0 0.0
      %2060 = vmatpush2.msra.mxu0 0.0
      %2061 = vmatprep.subr.mxu0 0.0
      %2062 = vmatpush2.msra.mxu0 0.0
      %2063 = vmatprep.subr.mxu0 0.0
      %2064 = vmatpush2.msra.mxu0 0.0
      %2065 = vmatprep.subr.mxu0 0.0
      %2066 = vmatpush2.msra.mxu0 0.0
      %2067 = vmatprep.subr.mxu0 0.0
      %2068 = vmatpush2.msra.mxu0 0.0
      %2069 = vmatprep.mubr.f32.mxu0 0.0
      %2070 = vmatmul.mubr.f32.gmra.mxu0 %v2003
      %v2071 = vpop.f32.mrf.mxu0
      %v2072 = vadd.f32 %v2001, %v2071
      %v2073 = vpop.f32.mrf.mxu0
      %2074 = vdwg.mxu0
      %2075 = vst [vmem:[#allocation13] sm:$0xff] %v2072
    $region61: #{tpu_custom_call.1} parent=1 // pred_fallthru
      _
    // Predicated region
    $region62: #{tpu_custom_call.1} parent=1 // pred_check
      _
    $region63: #{tpu_custom_call.1} parent=1 // pred_check_branch
      %2077 = sbr.rel (0) target = $region65
    $region64: #{tpu_custom_call.1} parent=1 // pred_region
      %s2079 = ssub.s32 128, 128
      %2080 = vsyncadd [#allocation6], %s2079
      %s2082 = sshll.u32 [#allocation13], 4
      %s2083 = int_to_ptr.vmem [resolvable:$true] %s2082
      %2085 = dma.vmem_to_hbm [thread:$0]  %s2083, 128, %s8, [#allocation6]
    $region65: #{tpu_custom_call.1} parent=1 // pred_fallthru
      _
    // Predicated region
    $region66: #{tpu_custom_call.1} parent=1 // pred_check
      _
    $region67: #{tpu_custom_call.1} parent=1 // pred_check_branch
      %2087 = sbr.rel (0) target = $region69
    $region68: #{tpu_custom_call.1} parent=1 // pred_region
      %2088 = dma.done [#allocation6], 128
    $region69: #{tpu_custom_call.1} parent=1 // pred_fallthru
      _
    %2089 = vsyncpa [#allocation5], 1
    %2090 = vsyncpa [#allocation8], 1
    %2091 = vsyncpa [#allocation11], 1
    %2092 = vsyncpa [#allocation6], 1

</llo_original>
